<compile_context>
chip_gen: v7x
topology: tpu7x:2x2x1
jax: 0.10.0
libtpu: 0.0.40
codegen_flags: <defaults>
</compile_context>

<pallas_src>
import functools
import math

import jax
import jax.numpy as jnp
from jax.experimental import pallas as pl
from jax.experimental.pallas import tpu as pltpu

EPS = 1e-5


def _layernorm(x, scale, shift):
    # x: (T, E); scale/shift: (1, E) -> broadcast over rows.  Biased variance.
    mean = jnp.mean(x, axis=-1, keepdims=True)
    var = jnp.mean((x - mean) ** 2, axis=-1, keepdims=True)
    return scale * ((x - mean) * jax.lax.rsqrt(var + EPS)) + shift


def transformer_block_kernel(x_ref, wqkv_ref, wo_ref, p_ref, out_ref, *, num_heads):
    # x_ref:    (Bb, T, E)         activation block (Bb batch rows per grid step)
    # wqkv_ref: (H, E, 3*hd)       per-head packed [Wq*inv_sqrt(hd) | Wk | Wv]
    # wo_ref:   (H, hd, E)         out-proj weight split per head along its input dim
    # p_ref:    (8, E)             rows: [bo, s1, b1, s2, b2, pad, pad, pad]
    bo = p_ref[0:1, :]
    s1 = p_ref[1:2, :]
    b1 = p_ref[2:3, :]
    s2 = p_ref[3:4, :]
    b2 = p_ref[4:5, :]

    wqkv = wqkv_ref[...]                       # (H, E, 3*hd)
    wo = wo_ref[...]                           # (H, hd, E)

    n_b, T, E = x_ref.shape
    hd = E // num_heads

    # Causal mask (True = masked / future position), shared by all heads & batches.
    row = jax.lax.broadcasted_iota(jnp.int32, (T, T), 0)
    col = jax.lax.broadcasted_iota(jnp.int32, (T, T), 1)
    causal = (col > row)[None, :, :]           # (1, T, T)

    for b in range(n_b):                       # static, tiny (<= 2): unrolled
        x = x_ref[b]                           # (T, E)

        # ---- norm1 ----
        xn = _layernorm(x, s1, b1)

        # ---- fused, head-batched QKV projection (one batched MXU sequence) ----
        xh = jnp.broadcast_to(xn[None], (num_heads, T, E))          # (H, T, E)
        qkv = jax.lax.dot_general(
            xh, wqkv,
            dimension_numbers=(((2,), (1,)), ((0,), (0,))),
            preferred_element_type=jnp.float32)                     # (H, T, 3*hd)
        q = qkv[:, :, 0:hd]            # 1/sqrt(hd) already folded into Wq columns
        k = qkv[:, :, hd:2 * hd]
        v = qkv[:, :, 2 * hd:3 * hd]

        # ---- causal attention, batched over heads ----
        s = jax.lax.dot_general(
            q, k, dimension_numbers=(((2,), (2,)), ((0,), (0,))),
            preferred_element_type=jnp.float32)                     # (H, T, T)
        s = jnp.where(causal, -jnp.inf, s)     # mask first (matches masked_fill_)
        m = jnp.max(s, axis=-1, keepdims=True)                      # diag -> finite
        p = jnp.exp(s - m)
        denom = jnp.sum(p, axis=-1, keepdims=True)
        p = p * pl.reciprocal(denom, approx=True)                   # EUP, not VALU

        ctx = jax.lax.dot_general(
            p, v, dimension_numbers=(((2,), (1,)), ((0,), (0,))),
            preferred_element_type=jnp.float32)                     # (H, T, hd)

        # ---- out-proj: head-batched matmul + reduce over heads (no concat) ----
        proj = jax.lax.dot_general(
            ctx, wo, dimension_numbers=(((2,), (1,)), ((0,), (0,))),
            preferred_element_type=jnp.float32)                     # (H, T, E)
        attn = jnp.sum(proj, axis=0) + bo                           # (T, E)

        # ---- residual 1, norm2 + identity FeedForward + residual 2 ----
        h1 = x + attn
        out_ref[b] = (h1 + _layernorm(h1, s2, b2)).astype(out_ref.dtype)


def _batch_per_grid_step(batch):
    # v7x has 2 TensorCores/chip: keep a parallel batch grid so both cores get work.
    # v5e/v6e are single-TC: collapse to one grid step (each step costs ~600 cycles of
    # fixed pipeline overhead, comparable to the whole compute at this size).
    try:
        kind = jax.devices()[0].device_kind.lower()
    except Exception:
        kind = ""
    n_cores = 2 if "v7" in kind else 1
    if n_cores > 1 and batch % n_cores == 0:
        return batch // n_cores
    return batch


def transformer_block(x, params, num_heads, batch_per_step=None):
    B, T, E = x.shape
    hd = E // num_heads
    if batch_per_step is None:
        batch_per_step = _batch_per_grid_step(B)
    n_steps = B // batch_per_step

    # ---- trace-time weight packing (plain JAX, outside the kernel) ----
    inv_sqrt_hd = 1.0 / math.sqrt(hd)
    wq3 = (params["wq"] * inv_sqrt_hd).reshape(E, num_heads, hd)
    wk3 = params["wk"].reshape(E, num_heads, hd)
    wv3 = params["wv"].reshape(E, num_heads, hd)
    wqkv = jnp.transpose(jnp.concatenate([wq3, wk3, wv3], axis=-1), (1, 0, 2))  # (H,E,3hd)
    wo3 = params["wo"].reshape(num_heads, hd, E)                                # (H,hd,E)
    p_packed = jnp.concatenate(
        [params["bo"], params["s1"], params["b1"], params["s2"], params["b2"],
         jnp.zeros((3, E), x.dtype)], axis=0)                                   # (8, E)

    kernel = functools.partial(transformer_block_kernel, num_heads=num_heads)
    return pl.pallas_call(
        kernel,
        out_shape=jax.ShapeDtypeStruct((B, T, E), x.dtype),
        grid=(n_steps,),
        in_specs=[
            pl.BlockSpec((batch_per_step, T, E), lambda g: (g, 0, 0)),   # x
            pl.BlockSpec((num_heads, E, 3 * hd), lambda g: (0, 0, 0)),   # packed QKV
            pl.BlockSpec((num_heads, hd, E), lambda g: (0, 0, 0)),       # out-proj W
            pl.BlockSpec((8, E), lambda g: (0, 0)),                      # packed vecs
        ],
        out_specs=pl.BlockSpec((batch_per_step, T, E), lambda g: (g, 0, 0)),
        compiler_params=pltpu.CompilerParams(dimension_semantics=("parallel",)),
    )(x, wqkv, wo3, p_packed)


def reference_jax(x, params, num_heads):
    """Pure-JAX mirror of the PyTorch TransformerBlock.forward (eval mode)."""
    def ln(z, s, b):
        mean = z.mean(-1, keepdims=True)
        var = ((z - mean) ** 2).mean(-1, keepdims=True)
        return s * (z - mean) / jnp.sqrt(var + EPS) + b

    B, T, E = x.shape
    hd = E // num_heads
    xn = ln(x, params["s1"][0], params["b1"][0])
    q = xn @ params["wq"]
    k = xn @ params["wk"]
    v = xn @ params["wv"]
    q = q.reshape(B, T, num_heads, hd).transpose(0, 2, 1, 3)
    k = k.reshape(B, T, num_heads, hd).transpose(0, 2, 1, 3)
    v = v.reshape(B, T, num_heads, hd).transpose(0, 2, 1, 3)
    scores = jnp.einsum("bhtd,bhsd->bhts", q, k)
    mask = jnp.triu(jnp.ones((T, T), dtype=bool), k=1)
    scores = jnp.where(mask, -jnp.inf, scores)
    w = jax.nn.softmax(scores / math.sqrt(hd), axis=-1)
    ctx = jnp.einsum("bhts,bhsd->bhtd", w, v).transpose(0, 2, 1, 3).reshape(B, T, E)
    attn = ctx @ params["wo"] + params["bo"][0]
    h1 = x + attn
    return h1 + ln(h1, params["s2"][0], params["b2"][0])


if __name__ == "__main__":
    # cfg: emb_dim=32, context_length=8, n_heads=4, drop_rate=0.0, qkv_bias=False
    B, T, E, H = 2, 8, 32, 4
    key = jax.random.PRNGKey(0)
    kx, kq, kk, kv, ko, kb = jax.random.split(key, 6)

    x = jax.random.normal(kx, (B, T, E), dtype=jnp.float32)

    params = {
        # Linear weights stored as (in, out) == torch weight.T
        "wq": 0.02 * jax.random.normal(kq, (E, E), dtype=jnp.float32),
        "wk": 0.02 * jax.random.normal(kk, (E, E), dtype=jnp.float32),
        "wv": 0.02 * jax.random.normal(kv, (E, E), dtype=jnp.float32),
        "wo": 0.02 * jax.random.normal(ko, (E, E), dtype=jnp.float32),
        "bo": 0.02 * jax.random.normal(kb, (1, E), dtype=jnp.float32),
        # LayerNorm params: both scale and shift initialized to ones (per module)
        "s1": jnp.ones((1, E), dtype=jnp.float32),
        "b1": jnp.ones((1, E), dtype=jnp.float32),
        "s2": jnp.ones((1, E), dtype=jnp.float32),
        "b2": jnp.ones((1, E), dtype=jnp.float32),
    }

    out = transformer_block(x, params, num_heads=H)
    out = jax.block_until_ready(out)

    ref = reference_jax(x, params, num_heads=H)
    assert out.shape == (B, T, E)
    # slightly looser tolerance because the softmax denominator uses the TPU's
    # approximate (EUP) reciprocal
    assert jnp.allclose(out, ref, rtol=2e-3, atol=2e-3), "mismatch vs pure-JAX reference"

    print("KERNEL_OK")
</pallas_src>

<mosaic_0001>
module attributes {stable_mosaic.version = 11 : i64} {
  func.func @transformer_block_kernel(%arg0: i32, %arg1: memref<2x8x32xf32, #tpu.memory_space<vmem>>, %arg2: memref<4x32x24xf32, #tpu.memory_space<vmem>>, %arg3: memref<4x8x32xf32, #tpu.memory_space<vmem>>, %arg4: memref<8x32xf32, #tpu.memory_space<vmem>>, %arg5: memref<2x8x32xf32, #tpu.memory_space<vmem>>) attributes {dimension_semantics = [#tpu.dimension_semantics<parallel>], iteration_bounds = array<i64: 1>, scalar_prefetch = 0 : i64, scratch_operands = 0 : i64, tpu.core_type = #tpu.core_type<tc>, window_params = [{transform_indices = @transform_0, window_bounds = array<i64: 2, 8, 32>}, {pipeline_mode = #tpu.pipeline_mode<synchronous>, transform_indices = @transform_1, window_bounds = array<i64: 4, 32, 24>}, {pipeline_mode = #tpu.pipeline_mode<synchronous>, transform_indices = @transform_2, window_bounds = array<i64: 4, 8, 32>}, {pipeline_mode = #tpu.pipeline_mode<synchronous>, transform_indices = @transform_3, window_bounds = array<i64: 8, 32>}, {transform_indices = @transform_4, window_bounds = array<i64: 2, 8, 32>}]} {
    %c0 = arith.constant 0 : index
    %c0_0 = arith.constant 0 : index
    %0 = vector.load %arg4[%c0, %c0_0] : memref<8x32xf32, #tpu.memory_space<vmem>>, vector<1x32xf32>
    %c1 = arith.constant 1 : index
    %c0_1 = arith.constant 0 : index
    %1 = vector.load %arg4[%c1, %c0_1] : memref<8x32xf32, #tpu.memory_space<vmem>>, vector<1x32xf32>
    %c2 = arith.constant 2 : index
    %c0_2 = arith.constant 0 : index
    %2 = vector.load %arg4[%c2, %c0_2] : memref<8x32xf32, #tpu.memory_space<vmem>>, vector<1x32xf32>
    %c3 = arith.constant 3 : index
    %c0_3 = arith.constant 0 : index
    %3 = vector.load %arg4[%c3, %c0_3] : memref<8x32xf32, #tpu.memory_space<vmem>>, vector<1x32xf32>
    %c4 = arith.constant 4 : index
    %c0_4 = arith.constant 0 : index
    %4 = vector.load %arg4[%c4, %c0_4] : memref<8x32xf32, #tpu.memory_space<vmem>>, vector<1x32xf32>
    %c0_5 = arith.constant 0 : index
    %c0_6 = arith.constant 0 : index
    %c0_7 = arith.constant 0 : index
    %5 = vector.load %arg2[%c0_5, %c0_6, %c0_7] : memref<4x32x24xf32, #tpu.memory_space<vmem>>, vector<4x32x24xf32>
    %c0_8 = arith.constant 0 : index
    %c0_9 = arith.constant 0 : index
    %c0_10 = arith.constant 0 : index
    %6 = vector.load %arg3[%c0_8, %c0_9, %c0_10] : memref<4x8x32xf32, #tpu.memory_space<vmem>>, vector<4x8x32xf32>
    %7 = tpu.iota {dimensions = array<i32: 0>} : vector<8x8xi32>
    %8 = tpu.iota {dimensions = array<i32: 1>} : vector<8x8xi32>
    %9 = arith.cmpi sgt, %8, %7 : vector<8x8xi32>
    %10 = vector.shape_cast %9 : vector<8x8xi1> to vector<1x8x8xi1>
    %c0_11 = arith.constant 0 : index
    %c0_12 = arith.constant 0 : index
    %c0_13 = arith.constant 0 : index
    %11 = vector.load %arg1[%c0_11, %c0_12, %c0_13] : memref<2x8x32xf32, #tpu.memory_space<vmem>>, vector<1x8x32xf32>
    %12 = vector.shape_cast %11 : vector<1x8x32xf32> to vector<8x32xf32>
    %cst = arith.constant dense<0.000000e+00> : vector<8xf32>
    %13 = vector.multi_reduction <add>, %12, %cst [1] : vector<8x32xf32> to vector<8xf32>
    %14 = vector.shape_cast %13 : vector<8xf32> to vector<8x1xf32>
    %cst_14 = arith.constant 3.200000e+01 : f32
    %15 = vector.broadcast %cst_14 : f32 to vector<8x1xf32>
    %16 = arith.divf %14, %15 : vector<8x1xf32>
    %17 = vector.broadcast %16 : vector<8x1xf32> to vector<8x32xf32>
    %18 = arith.subf %12, %17 : vector<8x32xf32>
    %19 = arith.mulf %18, %18 : vector<8x32xf32>
    %cst_15 = arith.constant dense<0.000000e+00> : vector<8xf32>
    %20 = vector.multi_reduction <add>, %19, %cst_15 [1] : vector<8x32xf32> to vector<8xf32>
    %21 = vector.shape_cast %20 : vector<8xf32> to vector<8x1xf32>
    %cst_16 = arith.constant 3.200000e+01 : f32
    %22 = vector.broadcast %cst_16 : f32 to vector<8x1xf32>
    %23 = arith.divf %21, %22 : vector<8x1xf32>
    %24 = vector.broadcast %16 : vector<8x1xf32> to vector<8x32xf32>
    %25 = arith.subf %12, %24 : vector<8x32xf32>
    %cst_17 = arith.constant 9.99999974E-6 : f32
    %26 = vector.broadcast %cst_17 : f32 to vector<8x1xf32>
    %27 = arith.addf %23, %26 : vector<8x1xf32>
    %28 = math.rsqrt %27 : vector<8x1xf32>
    %29 = vector.broadcast %28 : vector<8x1xf32> to vector<8x32xf32>
    %30 = arith.mulf %25, %29 : vector<8x32xf32>
    %31 = vector.broadcast %1 : vector<1x32xf32> to vector<8x32xf32>
    %32 = arith.mulf %31, %30 : vector<8x32xf32>
    %33 = vector.broadcast %2 : vector<1x32xf32> to vector<8x32xf32>
    %34 = arith.addf %32, %33 : vector<8x32xf32>
    %35 = vector.shape_cast %34 : vector<8x32xf32> to vector<1x8x32xf32>
    %36 = vector.shape_cast %35 : vector<1x8x32xf32> to vector<1x8x32xf32>
    %37 = vector.broadcast %36 : vector<1x8x32xf32> to vector<4x8x32xf32>
    %cst_18 = arith.constant dense<0.000000e+00> : vector<4x8x24xf32>
    %38 = tpu.matmul %37, %5, %cst_18 {dimension_numbers = #tpu.dot_dimension_numbers<[2], [1], [1], [2], [0, 0, 0, 1, 1, 2], [0], [0]>} : vector<4x8x32xf32>, vector<4x32x24xf32>, vector<4x8x24xf32> -> vector<4x8x24xf32>
    %39 = vector.extract_strided_slice %38 {offsets = [0, 0, 0], sizes = [4, 8, 8], strides = [1, 1, 1]} : vector<4x8x24xf32> to vector<4x8x8xf32>
    %40 = vector.extract_strided_slice %38 {offsets = [0, 0, 8], sizes = [4, 8, 8], strides = [1, 1, 1]} : vector<4x8x24xf32> to vector<4x8x8xf32>
    %41 = vector.extract_strided_slice %38 {offsets = [0, 0, 16], sizes = [4, 8, 8], strides = [1, 1, 1]} : vector<4x8x24xf32> to vector<4x8x8xf32>
    %cst_19 = arith.constant dense<0.000000e+00> : vector<4x8x8xf32>
    %42 = tpu.matmul %39, %40, %cst_19 {dimension_numbers = #tpu.dot_dimension_numbers<[2], [2], [1], [1], [0, 0, 0, 1, 1, 1], [0], [0]>} : vector<4x8x8xf32>, vector<4x8x8xf32>, vector<4x8x8xf32> -> vector<4x8x8xf32>
    %cst_20 = arith.constant 0xFF800000 : f32
    %43 = vector.shape_cast %10 : vector<1x8x8xi1> to vector<1x8x8xi1>
    %44 = vector.broadcast %43 : vector<1x8x8xi1> to vector<4x8x8xi1>
    %45 = vector.broadcast %cst_20 : f32 to vector<4x8x8xf32>
    %46 = arith.select %44, %45, %42 : vector<4x8x8xi1>, vector<4x8x8xf32>
    %cst_21 = arith.constant dense<0xFF800000> : vector<4x8xf32>
    %47 = vector.multi_reduction <maximumf>, %46, %cst_21 [2] : vector<4x8x8xf32> to vector<4x8xf32>
    %48 = vector.shape_cast %47 : vector<4x8xf32> to vector<4x8x1xf32>
    %49 = vector.broadcast %48 : vector<4x8x1xf32> to vector<4x8x8xf32>
    %50 = arith.subf %46, %49 : vector<4x8x8xf32>
    %51 = math.exp %50 : vector<4x8x8xf32>
    %cst_22 = arith.constant dense<0.000000e+00> : vector<4x8xf32>
    %52 = vector.multi_reduction <add>, %51, %cst_22 [2] : vector<4x8x8xf32> to vector<4x8xf32>
    %53 = vector.shape_cast %52 : vector<4x8xf32> to vector<4x8x1xf32>
    %54 = tpu.reciprocal %53 {approx = true} : vector<4x8x1xf32> -> vector<4x8x1xf32>
    %55 = vector.broadcast %54 : vector<4x8x1xf32> to vector<4x8x8xf32>
    %56 = arith.mulf %51, %55 : vector<4x8x8xf32>
    %cst_23 = arith.constant dense<0.000000e+00> : vector<4x8x8xf32>
    %57 = tpu.matmul %56, %41, %cst_23 {dimension_numbers = #tpu.dot_dimension_numbers<[2], [1], [1], [2], [0, 0, 0, 1, 1, 2], [0], [0]>} : vector<4x8x8xf32>, vector<4x8x8xf32>, vector<4x8x8xf32> -> vector<4x8x8xf32>
    %cst_24 = arith.constant dense<0.000000e+00> : vector<4x8x32xf32>
    %58 = tpu.matmul %57, %6, %cst_24 {dimension_numbers = #tpu.dot_dimension_numbers<[2], [1], [1], [2], [0, 0, 0, 1, 1, 2], [0], [0]>} : vector<4x8x8xf32>, vector<4x8x32xf32>, vector<4x8x32xf32> -> vector<4x8x32xf32>
    %cst_25 = arith.constant dense<0.000000e+00> : vector<8x32xf32>
    %59 = vector.multi_reduction <add>, %58, %cst_25 [0] : vector<4x8x32xf32> to vector<8x32xf32>
    %60 = vector.broadcast %0 : vector<1x32xf32> to vector<8x32xf32>
    %61 = arith.addf %59, %60 : vector<8x32xf32>
    %62 = arith.addf %12, %61 : vector<8x32xf32>
    %cst_26 = arith.constant dense<0.000000e+00> : vector<8xf32>
    %63 = vector.multi_reduction <add>, %62, %cst_26 [1] : vector<8x32xf32> to vector<8xf32>
    %64 = vector.shape_cast %63 : vector<8xf32> to vector<8x1xf32>
    %cst_27 = arith.constant 3.200000e+01 : f32
    %65 = vector.broadcast %cst_27 : f32 to vector<8x1xf32>
    %66 = arith.divf %64, %65 : vector<8x1xf32>
    %67 = vector.broadcast %66 : vector<8x1xf32> to vector<8x32xf32>
    %68 = arith.subf %62, %67 : vector<8x32xf32>
    %69 = arith.mulf %68, %68 : vector<8x32xf32>
    %cst_28 = arith.constant dense<0.000000e+00> : vector<8xf32>
    %70 = vector.multi_reduction <add>, %69, %cst_28 [1] : vector<8x32xf32> to vector<8xf32>
    %71 = vector.shape_cast %70 : vector<8xf32> to vector<8x1xf32>
    %cst_29 = arith.constant 3.200000e+01 : f32
    %72 = vector.broadcast %cst_29 : f32 to vector<8x1xf32>
    %73 = arith.divf %71, %72 : vector<8x1xf32>
    %74 = vector.broadcast %66 : vector<8x1xf32> to vector<8x32xf32>
    %75 = arith.subf %62, %74 : vector<8x32xf32>
    %cst_30 = arith.constant 9.99999974E-6 : f32
    %76 = vector.broadcast %cst_30 : f32 to vector<8x1xf32>
    %77 = arith.addf %73, %76 : vector<8x1xf32>
    %78 = math.rsqrt %77 : vector<8x1xf32>
    %79 = vector.broadcast %78 : vector<8x1xf32> to vector<8x32xf32>
    %80 = arith.mulf %75, %79 : vector<8x32xf32>
    %81 = vector.broadcast %3 : vector<1x32xf32> to vector<8x32xf32>
    %82 = arith.mulf %81, %80 : vector<8x32xf32>
    %83 = vector.broadcast %4 : vector<1x32xf32> to vector<8x32xf32>
    %84 = arith.addf %82, %83 : vector<8x32xf32>
    %85 = arith.addf %62, %84 : vector<8x32xf32>
    %c0_31 = arith.constant 0 : index
    %c0_32 = arith.constant 0 : index
    %c0_33 = arith.constant 0 : index
    %86 = vector.load %arg5[%c0_31, %c0_32, %c0_33] : memref<2x8x32xf32, #tpu.memory_space<vmem>>, vector<1x8x32xf32>
    %87 = vector.shape_cast %86 : vector<1x8x32xf32> to vector<8x32xf32>
    %88 = vector.shape_cast %85 : vector<8x32xf32> to vector<1x8x32xf32>
    tpu.vector_store %arg5[%c0_31, %c0_32, %c0_33], %88 {strides = array<i32>} : memref<2x8x32xf32, #tpu.memory_space<vmem>>, vector<1x8x32xf32>,
    %c1_34 = arith.constant 1 : index
    %c0_35 = arith.constant 0 : index
    %c0_36 = arith.constant 0 : index
    %89 = vector.load %arg1[%c1_34, %c0_35, %c0_36] : memref<2x8x32xf32, #tpu.memory_space<vmem>>, vector<1x8x32xf32>
    %90 = vector.shape_cast %89 : vector<1x8x32xf32> to vector<8x32xf32>
    %cst_37 = arith.constant dense<0.000000e+00> : vector<8xf32>
    %91 = vector.multi_reduction <add>, %90, %cst_37 [1] : vector<8x32xf32> to vector<8xf32>
    %92 = vector.shape_cast %91 : vector<8xf32> to vector<8x1xf32>
    %cst_38 = arith.constant 3.200000e+01 : f32
    %93 = vector.broadcast %cst_38 : f32 to vector<8x1xf32>
    %94 = arith.divf %92, %93 : vector<8x1xf32>
    %95 = vector.broadcast %94 : vector<8x1xf32> to vector<8x32xf32>
    %96 = arith.subf %90, %95 : vector<8x32xf32>
    %97 = arith.mulf %96, %96 : vector<8x32xf32>
    %cst_39 = arith.constant dense<0.000000e+00> : vector<8xf32>
    %98 = vector.multi_reduction <add>, %97, %cst_39 [1] : vector<8x32xf32> to vector<8xf32>
    %99 = vector.shape_cast %98 : vector<8xf32> to vector<8x1xf32>
    %cst_40 = arith.constant 3.200000e+01 : f32
    %100 = vector.broadcast %cst_40 : f32 to vector<8x1xf32>
    %101 = arith.divf %99, %100 : vector<8x1xf32>
    %102 = vector.broadcast %94 : vector<8x1xf32> to vector<8x32xf32>
    %103 = arith.subf %90, %102 : vector<8x32xf32>
    %cst_41 = arith.constant 9.99999974E-6 : f32
    %104 = vector.broadcast %cst_41 : f32 to vector<8x1xf32>
    %105 = arith.addf %101, %104 : vector<8x1xf32>
    %106 = math.rsqrt %105 : vector<8x1xf32>
    %107 = vector.broadcast %106 : vector<8x1xf32> to vector<8x32xf32>
    %108 = arith.mulf %103, %107 : vector<8x32xf32>
    %109 = vector.broadcast %1 : vector<1x32xf32> to vector<8x32xf32>
    %110 = arith.mulf %109, %108 : vector<8x32xf32>
    %111 = vector.broadcast %2 : vector<1x32xf32> to vector<8x32xf32>
    %112 = arith.addf %110, %111 : vector<8x32xf32>
    %113 = vector.shape_cast %112 : vector<8x32xf32> to vector<1x8x32xf32>
    %114 = vector.shape_cast %113 : vector<1x8x32xf32> to vector<1x8x32xf32>
    %115 = vector.broadcast %114 : vector<1x8x32xf32> to vector<4x8x32xf32>
    %cst_42 = arith.constant dense<0.000000e+00> : vector<4x8x24xf32>
    %116 = tpu.matmul %115, %5, %cst_42 {dimension_numbers = #tpu.dot_dimension_numbers<[2], [1], [1], [2], [0, 0, 0, 1, 1, 2], [0], [0]>} : vector<4x8x32xf32>, vector<4x32x24xf32>, vector<4x8x24xf32> -> vector<4x8x24xf32>
    %117 = vector.extract_strided_slice %116 {offsets = [0, 0, 0], sizes = [4, 8, 8], strides = [1, 1, 1]} : vector<4x8x24xf32> to vector<4x8x8xf32>
    %118 = vector.extract_strided_slice %116 {offsets = [0, 0, 8], sizes = [4, 8, 8], strides = [1, 1, 1]} : vector<4x8x24xf32> to vector<4x8x8xf32>
    %119 = vector.extract_strided_slice %116 {offsets = [0, 0, 16], sizes = [4, 8, 8], strides = [1, 1, 1]} : vector<4x8x24xf32> to vector<4x8x8xf32>
    %cst_43 = arith.constant dense<0.000000e+00> : vector<4x8x8xf32>
    %120 = tpu.matmul %117, %118, %cst_43 {dimension_numbers = #tpu.dot_dimension_numbers<[2], [2], [1], [1], [0, 0, 0, 1, 1, 1], [0], [0]>} : vector<4x8x8xf32>, vector<4x8x8xf32>, vector<4x8x8xf32> -> vector<4x8x8xf32>
    %cst_44 = arith.constant 0xFF800000 : f32
    %121 = vector.shape_cast %10 : vector<1x8x8xi1> to vector<1x8x8xi1>
    %122 = vector.broadcast %121 : vector<1x8x8xi1> to vector<4x8x8xi1>
    %123 = vector.broadcast %cst_44 : f32 to vector<4x8x8xf32>
    %124 = arith.select %122, %123, %120 : vector<4x8x8xi1>, vector<4x8x8xf32>
    %cst_45 = arith.constant dense<0xFF800000> : vector<4x8xf32>
    %125 = vector.multi_reduction <maximumf>, %124, %cst_45 [2] : vector<4x8x8xf32> to vector<4x8xf32>
    %126 = vector.shape_cast %125 : vector<4x8xf32> to vector<4x8x1xf32>
    %127 = vector.broadcast %126 : vector<4x8x1xf32> to vector<4x8x8xf32>
    %128 = arith.subf %124, %127 : vector<4x8x8xf32>
    %129 = math.exp %128 : vector<4x8x8xf32>
    %cst_46 = arith.constant dense<0.000000e+00> : vector<4x8xf32>
    %130 = vector.multi_reduction <add>, %129, %cst_46 [2] : vector<4x8x8xf32> to vector<4x8xf32>
    %131 = vector.shape_cast %130 : vector<4x8xf32> to vector<4x8x1xf32>
    %132 = tpu.reciprocal %131 {approx = true} : vector<4x8x1xf32> -> vector<4x8x1xf32>
    %133 = vector.broadcast %132 : vector<4x8x1xf32> to vector<4x8x8xf32>
    %134 = arith.mulf %129, %133 : vector<4x8x8xf32>
    %cst_47 = arith.constant dense<0.000000e+00> : vector<4x8x8xf32>
    %135 = tpu.matmul %134, %119, %cst_47 {dimension_numbers = #tpu.dot_dimension_numbers<[2], [1], [1], [2], [0, 0, 0, 1, 1, 2], [0], [0]>} : vector<4x8x8xf32>, vector<4x8x8xf32>, vector<4x8x8xf32> -> vector<4x8x8xf32>
    %cst_48 = arith.constant dense<0.000000e+00> : vector<4x8x32xf32>
    %136 = tpu.matmul %135, %6, %cst_48 {dimension_numbers = #tpu.dot_dimension_numbers<[2], [1], [1], [2], [0, 0, 0, 1, 1, 2], [0], [0]>} : vector<4x8x8xf32>, vector<4x8x32xf32>, vector<4x8x32xf32> -> vector<4x8x32xf32>
    %cst_49 = arith.constant dense<0.000000e+00> : vector<8x32xf32>
    %137 = vector.multi_reduction <add>, %136, %cst_49 [0] : vector<4x8x32xf32> to vector<8x32xf32>
    %138 = vector.broadcast %0 : vector<1x32xf32> to vector<8x32xf32>
    %139 = arith.addf %137, %138 : vector<8x32xf32>
    %140 = arith.addf %90, %139 : vector<8x32xf32>
    %cst_50 = arith.constant dense<0.000000e+00> : vector<8xf32>
    %141 = vector.multi_reduction <add>, %140, %cst_50 [1] : vector<8x32xf32> to vector<8xf32>
    %142 = vector.shape_cast %141 : vector<8xf32> to vector<8x1xf32>
    %cst_51 = arith.constant 3.200000e+01 : f32
    %143 = vector.broadcast %cst_51 : f32 to vector<8x1xf32>
    %144 = arith.divf %142, %143 : vector<8x1xf32>
    %145 = vector.broadcast %144 : vector<8x1xf32> to vector<8x32xf32>
    %146 = arith.subf %140, %145 : vector<8x32xf32>
    %147 = arith.mulf %146, %146 : vector<8x32xf32>
    %cst_52 = arith.constant dense<0.000000e+00> : vector<8xf32>
    %148 = vector.multi_reduction <add>, %147, %cst_52 [1] : vector<8x32xf32> to vector<8xf32>
    %149 = vector.shape_cast %148 : vector<8xf32> to vector<8x1xf32>
    %cst_53 = arith.constant 3.200000e+01 : f32
    %150 = vector.broadcast %cst_53 : f32 to vector<8x1xf32>
    %151 = arith.divf %149, %150 : vector<8x1xf32>
    %152 = vector.broadcast %144 : vector<8x1xf32> to vector<8x32xf32>
    %153 = arith.subf %140, %152 : vector<8x32xf32>
    %cst_54 = arith.constant 9.99999974E-6 : f32
    %154 = vector.broadcast %cst_54 : f32 to vector<8x1xf32>
    %155 = arith.addf %151, %154 : vector<8x1xf32>
    %156 = math.rsqrt %155 : vector<8x1xf32>
    %157 = vector.broadcast %156 : vector<8x1xf32> to vector<8x32xf32>
    %158 = arith.mulf %153, %157 : vector<8x32xf32>
    %159 = vector.broadcast %3 : vector<1x32xf32> to vector<8x32xf32>
    %160 = arith.mulf %159, %158 : vector<8x32xf32>
    %161 = vector.broadcast %4 : vector<1x32xf32> to vector<8x32xf32>
    %162 = arith.addf %160, %161 : vector<8x32xf32>
    %163 = arith.addf %140, %162 : vector<8x32xf32>
    %c1_55 = arith.constant 1 : index
    %c0_56 = arith.constant 0 : index
    %c0_57 = arith.constant 0 : index
    %164 = vector.load %arg5[%c1_55, %c0_56, %c0_57] : memref<2x8x32xf32, #tpu.memory_space<vmem>>, vector<1x8x32xf32>
    %165 = vector.shape_cast %164 : vector<1x8x32xf32> to vector<8x32xf32>
    %166 = vector.shape_cast %163 : vector<8x32xf32> to vector<1x8x32xf32>
    tpu.vector_store %arg5[%c1_55, %c0_56, %c0_57], %166 {strides = array<i32>} : memref<2x8x32xf32, #tpu.memory_space<vmem>>, vector<1x8x32xf32>,
    return
  }
  func.func @transform_0(%arg0: i32) -> (i32, i32, i32) {
    %c0_i32 = arith.constant 0 : i32
    %c0_i32_0 = arith.constant 0 : i32
    %c0_i32_1 = arith.constant 0 : i32
    return %arg0, %c0_i32, %c0_i32_0 : i32, i32, i32
  }
  func.func @transform_1(%arg0: i32) -> (i32, i32, i32) {
    %c0_i32 = arith.constant 0 : i32
    %c0_i32_0 = arith.constant 0 : i32
    %c0_i32_1 = arith.constant 0 : i32
    %c0_i32_2 = arith.constant 0 : i32
    return %c0_i32, %c0_i32_0, %c0_i32_1 : i32, i32, i32
  }
  func.func @transform_2(%arg0: i32) -> (i32, i32, i32) {
    %c0_i32 = arith.constant 0 : i32
    %c0_i32_0 = arith.constant 0 : i32
    %c0_i32_1 = arith.constant 0 : i32
    %c0_i32_2 = arith.constant 0 : i32
    return %c0_i32, %c0_i32_0, %c0_i32_1 : i32, i32, i32
  }
  func.func @transform_3(%arg0: i32) -> (i32, i32) {
    %c0_i32 = arith.constant 0 : i32
    %c0_i32_0 = arith.constant 0 : i32
    %c0_i32_1 = arith.constant 0 : i32
    return %c0_i32, %c0_i32_0 : i32, i32
  }
  func.func @transform_4(%arg0: i32) -> (i32, i32, i32) {
    %c0_i32 = arith.constant 0 : i32
    %c0_i32_0 = arith.constant 0 : i32
    %c0_i32_1 = arith.constant 0 : i32
    return %arg0, %c0_i32, %c0_i32_0 : i32, i32, i32
  }
}

</mosaic_0001>

<llo_original>
// kernel: tpu_custom_call.1
$region0: #{tpu_custom_call.1}
  #allocation0 [shape = 'u32[]', space=smem, size = 0x4, offset = 0x4, fixed_abs, tag = 'smem constant byte address 0x4 - core index']
  #allocation1 [shape = 'u32[144,128]{1,0:T(1,128)}', space=vmem, size = 0x12000, scoped, tag = 'internal scratch']
  %s0 = inlined_call_operand.vmem [shape: f32[2,8,32], index: 0, kind: input, shape index: {}]
  %s1 = inlined_call_operand.vmem [shape: f32[4,32,24], index: 1, kind: input, shape index: {}]
  %s2 = inlined_call_operand.vmem [shape: f32[4,8,32], index: 2, kind: input, shape index: {}]
  %s3 = inlined_call_operand.vmem [shape: f32[8,32], index: 3, kind: input, shape index: {}]
  %s4 = inlined_call_operand.hbm [shape: f32[2,8,32], index: 4, kind: output, shape index: {}]
  %s5 = sld [smem:[#allocation0]]
  $region26: #{tpu_custom_call.1} parent=0
    _
  %s7 = ssub.s32 1, %s5
  %s8 = scalar_select 0, %s7, %s5
  $region1: #{tpu_custom_call.1} parent=0
    #allocation2 [shape = 'u8[8192]{0}', space=vmem, size = 0x2000, scoped, tag = 'output window, operand 0, single buffered']
    #allocation3 [shape = 's32[1]{0}', space=sflag, size = 0x4, scoped, tag = 'scoped memory for tpu_custom_call.1']
    %9 = vsyncpa [#allocation3], 0
    // Predicated region
    $region2: #{tpu_custom_call.1} parent=1 // pred_check
      _
    $region3: #{tpu_custom_call.1} parent=1 // pred_check_branch
      %11 = sbr.rel (0) target = $region5
    $region4: #{tpu_custom_call.1} parent=1 // pred_region
      _
    $region5: #{tpu_custom_call.1} parent=1 // pred_fallthru
      _
    // Predicated region
    $region6: #{tpu_custom_call.1} parent=1 // pred_check
      _
    $region7: #{tpu_custom_call.1} parent=1 // pred_check_branch
      %13 = sbr.rel (0) target = $region9
    $region8: #{tpu_custom_call.1} parent=1 // pred_region
      _
    $region9: #{tpu_custom_call.1} parent=1 // pred_fallthru
      _
    // Predicated region
    $region10: #{tpu_custom_call.1} parent=1 // pred_check
      _
    $region11: #{tpu_custom_call.1} parent=1 // pred_check_branch
      %15 = sbr.rel (0) target = $region13
    $region12: #{tpu_custom_call.1} parent=1 // pred_region
      _
    $region13: #{tpu_custom_call.1} parent=1 // pred_fallthru
      _
    // Predicated region
    $region14: #{tpu_custom_call.1} parent=1 // pred_check
      _
    $region15: #{tpu_custom_call.1} parent=1 // pred_check_branch
      %17 = sbr.rel (0) target = $region17
    $region16: #{tpu_custom_call.1} parent=1 // pred_region
      _
    $region17: #{tpu_custom_call.1} parent=1 // pred_fallthru
      _
    %v18 = vld [vmem:[%s3] sm:$0x1]
    %v19 = vld [vmem:[%s3 + $0x1] sm:$0x1]
    %v20 = vld [vmem:[%s3 + $0x2] sm:$0x1]
    %v21 = vld [vmem:[%s3 + $0x3] sm:$0x1]
    %v22 = vld [vmem:[%s3 + $0x4] sm:$0x1]
    %v23 = vld [vmem:[%s1] sm:$0xff]
    %v24 = vld [vmem:[%s1 + $0x8] sm:$0xff]
    %v25 = vld [vmem:[%s1 + $0x10] sm:$0xff]
    %v26 = vld [vmem:[%s1 + $0x18] sm:$0xff]
    %v27 = vld [vmem:[%s1 + $0x20] sm:$0xff]
    %v28 = vld [vmem:[%s1 + $0x28] sm:$0xff]
    %v29 = vld [vmem:[%s1 + $0x30] sm:$0xff]
    %v30 = vld [vmem:[%s1 + $0x38] sm:$0xff]
    %v31 = vld [vmem:[%s1 + $0x40] sm:$0xff]
    %v32 = vld [vmem:[%s1 + $0x48] sm:$0xff]
    %v33 = vld [vmem:[%s1 + $0x50] sm:$0xff]
    %v34 = vld [vmem:[%s1 + $0x58] sm:$0xff]
    %v35 = vld [vmem:[%s1 + $0x60] sm:$0xff]
    %v36 = vld [vmem:[%s1 + $0x68] sm:$0xff]
    %v37 = vld [vmem:[%s1 + $0x70] sm:$0xff]
    %v38 = vld [vmem:[%s1 + $0x78] sm:$0xff]
    %v39 = vld [vmem:[%s2] sm:$0xff]
    %v40 = vld [vmem:[%s2 + $0x8] sm:$0xff]
    %v41 = vld [vmem:[%s2 + $0x10] sm:$0xff]
    %v42 = vld [vmem:[%s2 + $0x18] sm:$0xff]
    %v43 = vlaneseq
    %v44 = vshrl.u32 %v43, 7
    %v45 = vlaneseq
    %v46 = vand.u32 %v45, 127
    %vm47 = vcmp.gt.s32.totalorder %v46, %v44
    %v48 = vld [vmem:[%s0] sm:$0xff]
    %vm49 = vcmask 261120
    %v50 = vsel %vm49, %v48, 0.0
    %51 = vadd.xlane.f32.xlu0 %v50
    %v52 = vpop.xlane.xlu0 %51
    %v53 = vrcp.pop 32.0
    %v54 = vmul.f32 %v52, %v53
    %v55 = vsub.f32 %v48, %v54
    %v56 = vmul.f32 %v55, %v55
    %v57 = vsel %vm49, %v56, 0.0
    %58 = vadd.xlane.f32.xlu0 %v57
    %v59 = vpop.xlane.xlu0 %58
    %v60 = vmul.f32 %v59, %v53
    %v61 = vadd.f32 %v60, 1e-05
    %v62 = vrsqrt.pop %v61
    %v63 = vmul.f32 %v55, %v62
    %v64 = vlaneseq
    %v65 = vshrl.u32 %v64, 7
    %v66 = vsub.s32 0, %v65
    %v67 = vrot.slane %v19, %v66
    %v68 = vmul.f32 %v67, %v63
    %v69 = vlaneseq
    %v70 = vshrl.u32 %v69, 7
    %v71 = vsub.s32 0, %v70
    %v72 = vrot.slane %v20, %v71
    %v73 = vadd.f32 %v68, %v72
    %v75 = vsel %vm49, %v73, 0
    %77 = vmatprep.subr.mxu0 0.0
    %78 = vmatpush1.msra.mxu0 %v23
    %79 = vmatprep.subr.mxu0 0.0
    %80 = vmatpush1.msra.mxu0 %v24
    %81 = vmatprep.subr.mxu0 0.0
    %82 = vmatpush1.msra.mxu0 %v25
    %83 = vmatprep.subr.mxu0 0.0
    %84 = vmatpush1.msra.mxu0 %v26
    %85 = vmatprep.subr.mxu0 0.0
    %86 = vmatpush1.msra.mxu0 0.0
    %87 = vmatprep.subr.mxu0 0.0
    %88 = vmatpush1.msra.mxu0 0.0
    %89 = vmatprep.subr.mxu0 0.0
    %90 = vmatpush1.msra.mxu0 0.0
    %91 = vmatprep.subr.mxu0 0.0
    %92 = vmatpush1.msra.mxu0 0.0
    %93 = vmatprep.subr.mxu0 0.0
    %94 = vmatpush1.msra.mxu0 0.0
    %95 = vmatprep.subr.mxu0 0.0
    %96 = vmatpush1.msra.mxu0 0.0
    %97 = vmatprep.subr.mxu0 0.0
    %98 = vmatpush1.msra.mxu0 0.0
    %99 = vmatprep.subr.mxu0 0.0
    %100 = vmatpush1.msra.mxu0 0.0
    %101 = vmatprep.subr.mxu0 0.0
    %102 = vmatpush1.msra.mxu0 0.0
    %103 = vmatprep.subr.mxu0 0.0
    %104 = vmatpush1.msra.mxu0 0.0
    %105 = vmatprep.subr.mxu0 0.0
    %106 = vmatpush1.msra.mxu0 0.0
    %107 = vmatprep.subr.mxu0 0.0
    %108 = vmatpush1.msra.mxu0 0.0
    %109 = vmatprep.subr.mxu0 0.0
    %110 = vmatpush1.msra.mxu0 0.0
    %111 = vmatprep.subr.mxu0 0.0
    %112 = vmatpush1.msra.mxu0 0.0
    %113 = vmatprep.subr.mxu0 0.0
    %114 = vmatpush1.msra.mxu0 0.0
    %115 = vmatprep.subr.mxu0 0.0
    %116 = vmatpush1.msra.mxu0 0.0
    %117 = vmatprep.subr.mxu0 0.0
    %118 = vmatpush1.msra.mxu0 0.0
    %119 = vmatprep.subr.mxu0 0.0
    %120 = vmatpush1.msra.mxu0 0.0
    %121 = vmatprep.subr.mxu0 0.0
    %122 = vmatpush1.msra.mxu0 0.0
    %123 = vmatprep.subr.mxu0 0.0
    %124 = vmatpush1.msra.mxu0 0.0
    %125 = vmatprep.subr.mxu0 0.0
    %126 = vmatpush1.msra.mxu0 0.0
    %127 = vmatprep.subr.mxu0 0.0
    %128 = vmatpush1.msra.mxu0 0.0
    %129 = vmatprep.subr.mxu0 0.0
    %130 = vmatpush1.msra.mxu0 0.0
    %131 = vmatprep.subr.mxu0 0.0
    %132 = vmatpush1.msra.mxu0 0.0
    %133 = vmatprep.subr.mxu0 0.0
    %134 = vmatpush1.msra.mxu0 0.0
    %135 = vmatprep.subr.mxu0 0.0
    %136 = vmatpush1.msra.mxu0 0.0
    %137 = vmatprep.subr.mxu0 0.0
    %138 = vmatpush1.msra.mxu0 0.0
    %139 = vmatprep.subr.mxu0 0.0
    %140 = vmatpush1.msra.mxu0 0.0
    %141 = vmatprep.mubr.f32.mxu0 0.0
    %142 = vmatmul.mubr.f32.gmra.mrb[0].mxu0 %v75
    %v143 = vpop.f32.mrb[0].mxu0
    %v144 = vadd.f32 0.0, %v143
    %v145 = vpop.f32.mrb[0].mxu0
    %146 = vdwg.mxu0
    %147 = vmatprep.subr.mxu0 0.0
    %148 = vmatpush1.msra.mxu0 %v27
    %149 = vmatprep.subr.mxu0 0.0
    %150 = vmatpush1.msra.mxu0 %v28
    %151 = vmatprep.subr.mxu0 0.0
    %152 = vmatpush1.msra.mxu0 %v29
    %153 = vmatprep.subr.mxu0 0.0
    %154 = vmatpush1.msra.mxu0 %v30
    %155 = vmatprep.subr.mxu0 0.0
    %156 = vmatpush1.msra.mxu0 0.0
    %157 = vmatprep.subr.mxu0 0.0
    %158 = vmatpush1.msra.mxu0 0.0
    %159 = vmatprep.subr.mxu0 0.0
    %160 = vmatpush1.msra.mxu0 0.0
    %161 = vmatprep.subr.mxu0 0.0
    %162 = vmatpush1.msra.mxu0 0.0
    %163 = vmatprep.subr.mxu0 0.0
    %164 = vmatpush1.msra.mxu0 0.0
    %165 = vmatprep.subr.mxu0 0.0
    %166 = vmatpush1.msra.mxu0 0.0
    %167 = vmatprep.subr.mxu0 0.0
    %168 = vmatpush1.msra.mxu0 0.0
    %169 = vmatprep.subr.mxu0 0.0
    %170 = vmatpush1.msra.mxu0 0.0
    %171 = vmatprep.subr.mxu0 0.0
    %172 = vmatpush1.msra.mxu0 0.0
    %173 = vmatprep.subr.mxu0 0.0
    %174 = vmatpush1.msra.mxu0 0.0
    %175 = vmatprep.subr.mxu0 0.0
    %176 = vmatpush1.msra.mxu0 0.0
    %177 = vmatprep.subr.mxu0 0.0
    %178 = vmatpush1.msra.mxu0 0.0
    %179 = vmatprep.subr.mxu0 0.0
    %180 = vmatpush1.msra.mxu0 0.0
    %181 = vmatprep.subr.mxu0 0.0
    %182 = vmatpush1.msra.mxu0 0.0
    %183 = vmatprep.subr.mxu0 0.0
    %184 = vmatpush1.msra.mxu0 0.0
    %185 = vmatprep.subr.mxu0 0.0
    %186 = vmatpush1.msra.mxu0 0.0
    %187 = vmatprep.subr.mxu0 0.0
    %188 = vmatpush1.msra.mxu0 0.0
    %189 = vmatprep.subr.mxu0 0.0
    %190 = vmatpush1.msra.mxu0 0.0
    %191 = vmatprep.subr.mxu0 0.0
    %192 = vmatpush1.msra.mxu0 0.0
    %193 = vmatprep.subr.mxu0 0.0
    %194 = vmatpush1.msra.mxu0 0.0
    %195 = vmatprep.subr.mxu0 0.0
    %196 = vmatpush1.msra.mxu0 0.0
    %197 = vmatprep.subr.mxu0 0.0
    %198 = vmatpush1.msra.mxu0 0.0
    %199 = vmatprep.subr.mxu0 0.0
    %200 = vmatpush1.msra.mxu0 0.0
    %201 = vmatprep.subr.mxu0 0.0
    %202 = vmatpush1.msra.mxu0 0.0
    %203 = vmatprep.subr.mxu0 0.0
    %204 = vmatpush1.msra.mxu0 0.0
    %205 = vmatprep.subr.mxu0 0.0
    %206 = vmatpush1.msra.mxu0 0.0
    %207 = vmatprep.subr.mxu0 0.0
    %208 = vmatpush1.msra.mxu0 0.0
    %209 = vmatprep.subr.mxu0 0.0
    %210 = vmatpush1.msra.mxu0 0.0
    %211 = vmatprep.mubr.f32.mxu0 0.0
    %212 = vmatmul.mubr.f32.gmra.mrb[0].mxu0 %v75
    %v213 = vpop.f32.mrb[0].mxu0
    %v214 = vadd.f32 0.0, %v213
    %v215 = vpop.f32.mrb[0].mxu0
    %216 = vdwg.mxu0
    %217 = vmatprep.subr.mxu0 0.0
    %218 = vmatpush1.msra.mxu0 %v31
    %219 = vmatprep.subr.mxu0 0.0
    %220 = vmatpush1.msra.mxu0 %v32
    %221 = vmatprep.subr.mxu0 0.0
    %222 = vmatpush1.msra.mxu0 %v33
    %223 = vmatprep.subr.mxu0 0.0
    %224 = vmatpush1.msra.mxu0 %v34
    %225 = vmatprep.subr.mxu0 0.0
    %226 = vmatpush1.msra.mxu0 0.0
    %227 = vmatprep.subr.mxu0 0.0
    %228 = vmatpush1.msra.mxu0 0.0
    %229 = vmatprep.subr.mxu0 0.0
    %230 = vmatpush1.msra.mxu0 0.0
    %231 = vmatprep.subr.mxu0 0.0
    %232 = vmatpush1.msra.mxu0 0.0
    %233 = vmatprep.subr.mxu0 0.0
    %234 = vmatpush1.msra.mxu0 0.0
    %235 = vmatprep.subr.mxu0 0.0
    %236 = vmatpush1.msra.mxu0 0.0
    %237 = vmatprep.subr.mxu0 0.0
    %238 = vmatpush1.msra.mxu0 0.0
    %239 = vmatprep.subr.mxu0 0.0
    %240 = vmatpush1.msra.mxu0 0.0
    %241 = vmatprep.subr.mxu0 0.0
    %242 = vmatpush1.msra.mxu0 0.0
    %243 = vmatprep.subr.mxu0 0.0
    %244 = vmatpush1.msra.mxu0 0.0
    %245 = vmatprep.subr.mxu0 0.0
    %246 = vmatpush1.msra.mxu0 0.0
    %247 = vmatprep.subr.mxu0 0.0
    %248 = vmatpush1.msra.mxu0 0.0
    %249 = vmatprep.subr.mxu0 0.0
    %250 = vmatpush1.msra.mxu0 0.0
    %251 = vmatprep.subr.mxu0 0.0
    %252 = vmatpush1.msra.mxu0 0.0
    %253 = vmatprep.subr.mxu0 0.0
    %254 = vmatpush1.msra.mxu0 0.0
    %255 = vmatprep.subr.mxu0 0.0
    %256 = vmatpush1.msra.mxu0 0.0
    %257 = vmatprep.subr.mxu0 0.0
    %258 = vmatpush1.msra.mxu0 0.0
    %259 = vmatprep.subr.mxu0 0.0
    %260 = vmatpush1.msra.mxu0 0.0
    %261 = vmatprep.subr.mxu0 0.0
    %262 = vmatpush1.msra.mxu0 0.0
    %263 = vmatprep.subr.mxu0 0.0
    %264 = vmatpush1.msra.mxu0 0.0
    %265 = vmatprep.subr.mxu0 0.0
    %266 = vmatpush1.msra.mxu0 0.0
    %267 = vmatprep.subr.mxu0 0.0
    %268 = vmatpush1.msra.mxu0 0.0
    %269 = vmatprep.subr.mxu0 0.0
    %270 = vmatpush1.msra.mxu0 0.0
    %271 = vmatprep.subr.mxu0 0.0
    %272 = vmatpush1.msra.mxu0 0.0
    %273 = vmatprep.subr.mxu0 0.0
    %274 = vmatpush1.msra.mxu0 0.0
    %275 = vmatprep.subr.mxu0 0.0
    %276 = vmatpush1.msra.mxu0 0.0
    %277 = vmatprep.subr.mxu0 0.0
    %278 = vmatpush1.msra.mxu0 0.0
    %279 = vmatprep.subr.mxu0 0.0
    %280 = vmatpush1.msra.mxu0 0.0
    %281 = vmatprep.mubr.f32.mxu0 0.0
    %282 = vmatmul.mubr.f32.gmra.mrb[0].mxu0 %v75
    %v283 = vpop.f32.mrb[0].mxu0
    %v284 = vadd.f32 0.0, %v283
    %v285 = vpop.f32.mrb[0].mxu0
    %286 = vdwg.mxu0
    %287 = vmatprep.subr.mxu0 0.0
    %288 = vmatpush1.msra.mxu0 %v35
    %289 = vmatprep.subr.mxu0 0.0
    %290 = vmatpush1.msra.mxu0 %v36
    %291 = vmatprep.subr.mxu0 0.0
    %292 = vmatpush1.msra.mxu0 %v37
    %293 = vmatprep.subr.mxu0 0.0
    %294 = vmatpush1.msra.mxu0 %v38
    %295 = vmatprep.subr.mxu0 0.0
    %296 = vmatpush1.msra.mxu0 0.0
    %297 = vmatprep.subr.mxu0 0.0
    %298 = vmatpush1.msra.mxu0 0.0
    %299 = vmatprep.subr.mxu0 0.0
    %300 = vmatpush1.msra.mxu0 0.0
    %301 = vmatprep.subr.mxu0 0.0
    %302 = vmatpush1.msra.mxu0 0.0
    %303 = vmatprep.subr.mxu0 0.0
    %304 = vmatpush1.msra.mxu0 0.0
    %305 = vmatprep.subr.mxu0 0.0
    %306 = vmatpush1.msra.mxu0 0.0
    %307 = vmatprep.subr.mxu0 0.0
    %308 = vmatpush1.msra.mxu0 0.0
    %309 = vmatprep.subr.mxu0 0.0
    %310 = vmatpush1.msra.mxu0 0.0
    %311 = vmatprep.subr.mxu0 0.0
    %312 = vmatpush1.msra.mxu0 0.0
    %313 = vmatprep.subr.mxu0 0.0
    %314 = vmatpush1.msra.mxu0 0.0
    %315 = vmatprep.subr.mxu0 0.0
    %316 = vmatpush1.msra.mxu0 0.0
    %317 = vmatprep.subr.mxu0 0.0
    %318 = vmatpush1.msra.mxu0 0.0
    %319 = vmatprep.subr.mxu0 0.0
    %320 = vmatpush1.msra.mxu0 0.0
    %321 = vmatprep.subr.mxu0 0.0
    %322 = vmatpush1.msra.mxu0 0.0
    %323 = vmatprep.subr.mxu0 0.0
    %324 = vmatpush1.msra.mxu0 0.0
    %325 = vmatprep.subr.mxu0 0.0
    %326 = vmatpush1.msra.mxu0 0.0
    %327 = vmatprep.subr.mxu0 0.0
    %328 = vmatpush1.msra.mxu0 0.0
    %329 = vmatprep.subr.mxu0 0.0
    %330 = vmatpush1.msra.mxu0 0.0
    %331 = vmatprep.subr.mxu0 0.0
    %332 = vmatpush1.msra.mxu0 0.0
    %333 = vmatprep.subr.mxu0 0.0
    %334 = vmatpush1.msra.mxu0 0.0
    %335 = vmatprep.subr.mxu0 0.0
    %336 = vmatpush1.msra.mxu0 0.0
    %337 = vmatprep.subr.mxu0 0.0
    %338 = vmatpush1.msra.mxu0 0.0
    %339 = vmatprep.subr.mxu0 0.0
    %340 = vmatpush1.msra.mxu0 0.0
    %341 = vmatprep.subr.mxu0 0.0
    %342 = vmatpush1.msra.mxu0 0.0
    %343 = vmatprep.subr.mxu0 0.0
    %344 = vmatpush1.msra.mxu0 0.0
    %345 = vmatprep.subr.mxu0 0.0
    %346 = vmatpush1.msra.mxu0 0.0
    %347 = vmatprep.subr.mxu0 0.0
    %348 = vmatpush1.msra.mxu0 0.0
    %349 = vmatprep.subr.mxu0 0.0
    %350 = vmatpush1.msra.mxu0 0.0
    %351 = vmatprep.mubr.f32.mxu0 0.0
    %352 = vmatmul.mubr.f32.gmra.mrb[0].mxu0 %v75
    %v353 = vpop.f32.mrb[0].mxu0
    %v354 = vadd.f32 0.0, %v353
    %v355 = vpop.f32.mrb[0].mxu0
    %356 = vdwg.mxu0
    %358 = vrot.lane.b32.xlu0 %v144, 120
    %v359 = vpop.permute.xlu0 %358
    %vm360 = vcmask 64512
    %v361 = vsel %vm360, %v144, 0
    %v363 = vsel %vm360, %v359, 0
    %365 = vmatprep.subr.mxu0 0.0
    %366 = vmatpush1.xpose.msra.mxu0 %v363
    %367 = vmatprep.subr.mxu0 0.0
    %368 = vmatpush1.xpose.msra.mxu0 0.0
    %369 = vmatprep.subr.mxu0 0.0
    %370 = vmatpush1.xpose.msra.mxu0 0.0
    %371 = vmatprep.subr.mxu0 0.0
    %372 = vmatpush1.xpose.msra.mxu0 0.0
    %373 = vmatprep.subr.mxu0 0.0
    %374 = vmatpush1.xpose.msra.mxu0 0.0
    %375 = vmatprep.subr.mxu0 0.0
    %376 = vmatpush1.xpose.msra.mxu0 0.0
    %377 = vmatprep.subr.mxu0 0.0
    %378 = vmatpush1.xpose.msra.mxu0 0.0
    %379 = vmatprep.subr.mxu0 0.0
    %380 = vmatpush1.xpose.msra.mxu0 0.0
    %381 = vmatprep.subr.mxu0 0.0
    %382 = vmatpush1.xpose.msra.mxu0 0.0
    %383 = vmatprep.subr.mxu0 0.0
    %384 = vmatpush1.xpose.msra.mxu0 0.0
    %385 = vmatprep.subr.mxu0 0.0
    %386 = vmatpush1.xpose.msra.mxu0 0.0
    %387 = vmatprep.subr.mxu0 0.0
    %388 = vmatpush1.xpose.msra.mxu0 0.0
    %389 = vmatprep.subr.mxu0 0.0
    %390 = vmatpush1.xpose.msra.mxu0 0.0
    %391 = vmatprep.subr.mxu0 0.0
    %392 = vmatpush1.xpose.msra.mxu0 0.0
    %393 = vmatprep.subr.mxu0 0.0
    %394 = vmatpush1.xpose.msra.mxu0 0.0
    %395 = vmatprep.subr.mxu0 0.0
    %396 = vmatpush1.xpose.msra.mxu0 0.0
    %397 = vmatprep.subr.mxu0 0.0
    %398 = vmatpush1.xpose.msra.mxu0 0.0
    %399 = vmatprep.subr.mxu0 0.0
    %400 = vmatpush1.xpose.msra.mxu0 0.0
    %401 = vmatprep.subr.mxu0 0.0
    %402 = vmatpush1.xpose.msra.mxu0 0.0
    %403 = vmatprep.subr.mxu0 0.0
    %404 = vmatpush1.xpose.msra.mxu0 0.0
    %405 = vmatprep.subr.mxu0 0.0
    %406 = vmatpush1.xpose.msra.mxu0 0.0
    %407 = vmatprep.subr.mxu0 0.0
    %408 = vmatpush1.xpose.msra.mxu0 0.0
    %409 = vmatprep.subr.mxu0 0.0
    %410 = vmatpush1.xpose.msra.mxu0 0.0
    %411 = vmatprep.subr.mxu0 0.0
    %412 = vmatpush1.xpose.msra.mxu0 0.0
    %413 = vmatprep.subr.mxu0 0.0
    %414 = vmatpush1.xpose.msra.mxu0 0.0
    %415 = vmatprep.subr.mxu0 0.0
    %416 = vmatpush1.xpose.msra.mxu0 0.0
    %417 = vmatprep.subr.mxu0 0.0
    %418 = vmatpush1.xpose.msra.mxu0 0.0
    %419 = vmatprep.subr.mxu0 0.0
    %420 = vmatpush1.xpose.msra.mxu0 0.0
    %421 = vmatprep.subr.mxu0 0.0
    %422 = vmatpush1.xpose.msra.mxu0 0.0
    %423 = vmatprep.subr.mxu0 0.0
    %424 = vmatpush1.xpose.msra.mxu0 0.0
    %425 = vmatprep.subr.mxu0 0.0
    %426 = vmatpush1.xpose.msra.mxu0 0.0
    %427 = vmatprep.subr.mxu0 0.0
    %428 = vmatpush1.xpose.msra.mxu0 0.0
    %429 = vmatprep.mubr.f32.mxu0 0.0
    %430 = vmatmul.mubr.f32.gmra.mrb[0].mxu0 %v361
    %v431 = vpop.f32.mrb[0].mxu0
    %v432 = vadd.f32 0.0, %v431
    %v433 = vpop.f32.mrb[0].mxu0
    %434 = vdwg.mxu0
    %436 = vrot.lane.b32.xlu0 %v214, 120
    %v437 = vpop.permute.xlu0 %436
    %v438 = vsel %vm360, %v214, 0
    %v440 = vsel %vm360, %v437, 0
    %442 = vmatprep.subr.mxu0 0.0
    %443 = vmatpush1.xpose.msra.mxu0 %v440
    %444 = vmatprep.subr.mxu0 0.0
    %445 = vmatpush1.xpose.msra.mxu0 0.0
    %446 = vmatprep.subr.mxu0 0.0
    %447 = vmatpush1.xpose.msra.mxu0 0.0
    %448 = vmatprep.subr.mxu0 0.0
    %449 = vmatpush1.xpose.msra.mxu0 0.0
    %450 = vmatprep.subr.mxu0 0.0
    %451 = vmatpush1.xpose.msra.mxu0 0.0
    %452 = vmatprep.subr.mxu0 0.0
    %453 = vmatpush1.xpose.msra.mxu0 0.0
    %454 = vmatprep.subr.mxu0 0.0
    %455 = vmatpush1.xpose.msra.mxu0 0.0
    %456 = vmatprep.subr.mxu0 0.0
    %457 = vmatpush1.xpose.msra.mxu0 0.0
    %458 = vmatprep.subr.mxu0 0.0
    %459 = vmatpush1.xpose.msra.mxu0 0.0
    %460 = vmatprep.subr.mxu0 0.0
    %461 = vmatpush1.xpose.msra.mxu0 0.0
    %462 = vmatprep.subr.mxu0 0.0
    %463 = vmatpush1.xpose.msra.mxu0 0.0
    %464 = vmatprep.subr.mxu0 0.0
    %465 = vmatpush1.xpose.msra.mxu0 0.0
    %466 = vmatprep.subr.mxu0 0.0
    %467 = vmatpush1.xpose.msra.mxu0 0.0
    %468 = vmatprep.subr.mxu0 0.0
    %469 = vmatpush1.xpose.msra.mxu0 0.0
    %470 = vmatprep.subr.mxu0 0.0
    %471 = vmatpush1.xpose.msra.mxu0 0.0
    %472 = vmatprep.subr.mxu0 0.0
    %473 = vmatpush1.xpose.msra.mxu0 0.0
    %474 = vmatprep.subr.mxu0 0.0
    %475 = vmatpush1.xpose.msra.mxu0 0.0
    %476 = vmatprep.subr.mxu0 0.0
    %477 = vmatpush1.xpose.msra.mxu0 0.0
    %478 = vmatprep.subr.mxu0 0.0
    %479 = vmatpush1.xpose.msra.mxu0 0.0
    %480 = vmatprep.subr.mxu0 0.0
    %481 = vmatpush1.xpose.msra.mxu0 0.0
    %482 = vmatprep.subr.mxu0 0.0
    %483 = vmatpush1.xpose.msra.mxu0 0.0
    %484 = vmatprep.subr.mxu0 0.0
    %485 = vmatpush1.xpose.msra.mxu0 0.0
    %486 = vmatprep.subr.mxu0 0.0
    %487 = vmatpush1.xpose.msra.mxu0 0.0
    %488 = vmatprep.subr.mxu0 0.0
    %489 = vmatpush1.xpose.msra.mxu0 0.0
    %490 = vmatprep.subr.mxu0 0.0
    %491 = vmatpush1.xpose.msra.mxu0 0.0
    %492 = vmatprep.subr.mxu0 0.0
    %493 = vmatpush1.xpose.msra.mxu0 0.0
    %494 = vmatprep.subr.mxu0 0.0
    %495 = vmatpush1.xpose.msra.mxu0 0.0
    %496 = vmatprep.subr.mxu0 0.0
    %497 = vmatpush1.xpose.msra.mxu0 0.0
    %498 = vmatprep.subr.mxu0 0.0
    %499 = vmatpush1.xpose.msra.mxu0 0.0
    %500 = vmatprep.subr.mxu0 0.0
    %501 = vmatpush1.xpose.msra.mxu0 0.0
    %502 = vmatprep.subr.mxu0 0.0
    %503 = vmatpush1.xpose.msra.mxu0 0.0
    %504 = vmatprep.subr.mxu0 0.0
    %505 = vmatpush1.xpose.msra.mxu0 0.0
    %506 = vmatprep.mubr.f32.mxu0 0.0
    %507 = vmatmul.mubr.f32.gmra.mrb[0].mxu0 %v438
    %v508 = vpop.f32.mrb[0].mxu0
    %v509 = vadd.f32 0.0, %v508
    %v510 = vpop.f32.mrb[0].mxu0
    %511 = vdwg.mxu0
    %513 = vrot.lane.b32.xlu0 %v284, 120
    %v514 = vpop.permute.xlu0 %513
    %v515 = vsel %vm360, %v284, 0
    %v517 = vsel %vm360, %v514, 0
    %519 = vmatprep.subr.mxu0 0.0
    %520 = vmatpush1.xpose.msra.mxu0 %v517
    %521 = vmatprep.subr.mxu0 0.0
    %522 = vmatpush1.xpose.msra.mxu0 0.0
    %523 = vmatprep.subr.mxu0 0.0
    %524 = vmatpush1.xpose.msra.mxu0 0.0
    %525 = vmatprep.subr.mxu0 0.0
    %526 = vmatpush1.xpose.msra.mxu0 0.0
    %527 = vmatprep.subr.mxu0 0.0
    %528 = vmatpush1.xpose.msra.mxu0 0.0
    %529 = vmatprep.subr.mxu0 0.0
    %530 = vmatpush1.xpose.msra.mxu0 0.0
    %531 = vmatprep.subr.mxu0 0.0
    %532 = vmatpush1.xpose.msra.mxu0 0.0
    %533 = vmatprep.subr.mxu0 0.0
    %534 = vmatpush1.xpose.msra.mxu0 0.0
    %535 = vmatprep.subr.mxu0 0.0
    %536 = vmatpush1.xpose.msra.mxu0 0.0
    %537 = vmatprep.subr.mxu0 0.0
    %538 = vmatpush1.xpose.msra.mxu0 0.0
    %539 = vmatprep.subr.mxu0 0.0
    %540 = vmatpush1.xpose.msra.mxu0 0.0
    %541 = vmatprep.subr.mxu0 0.0
    %542 = vmatpush1.xpose.msra.mxu0 0.0
    %543 = vmatprep.subr.mxu0 0.0
    %544 = vmatpush1.xpose.msra.mxu0 0.0
    %545 = vmatprep.subr.mxu0 0.0
    %546 = vmatpush1.xpose.msra.mxu0 0.0
    %547 = vmatprep.subr.mxu0 0.0
    %548 = vmatpush1.xpose.msra.mxu0 0.0
    %549 = vmatprep.subr.mxu0 0.0
    %550 = vmatpush1.xpose.msra.mxu0 0.0
    %551 = vmatprep.subr.mxu0 0.0
    %552 = vmatpush1.xpose.msra.mxu0 0.0
    %553 = vmatprep.subr.mxu0 0.0
    %554 = vmatpush1.xpose.msra.mxu0 0.0
    %555 = vmatprep.subr.mxu0 0.0
    %556 = vmatpush1.xpose.msra.mxu0 0.0
    %557 = vmatprep.subr.mxu0 0.0
    %558 = vmatpush1.xpose.msra.mxu0 0.0
    %559 = vmatprep.subr.mxu0 0.0
    %560 = vmatpush1.xpose.msra.mxu0 0.0
    %561 = vmatprep.subr.mxu0 0.0
    %562 = vmatpush1.xpose.msra.mxu0 0.0
    %563 = vmatprep.subr.mxu0 0.0
    %564 = vmatpush1.xpose.msra.mxu0 0.0
    %565 = vmatprep.subr.mxu0 0.0
    %566 = vmatpush1.xpose.msra.mxu0 0.0
    %567 = vmatprep.subr.mxu0 0.0
    %568 = vmatpush1.xpose.msra.mxu0 0.0
    %569 = vmatprep.subr.mxu0 0.0
    %570 = vmatpush1.xpose.msra.mxu0 0.0
    %571 = vmatprep.subr.mxu0 0.0
    %572 = vmatpush1.xpose.msra.mxu0 0.0
    %573 = vmatprep.subr.mxu0 0.0
    %574 = vmatpush1.xpose.msra.mxu0 0.0
    %575 = vmatprep.subr.mxu0 0.0
    %576 = vmatpush1.xpose.msra.mxu0 0.0
    %577 = vmatprep.subr.mxu0 0.0
    %578 = vmatpush1.xpose.msra.mxu0 0.0
    %579 = vmatprep.subr.mxu0 0.0
    %580 = vmatpush1.xpose.msra.mxu0 0.0
    %581 = vmatprep.subr.mxu0 0.0
    %582 = vmatpush1.xpose.msra.mxu0 0.0
    %583 = vmatprep.mubr.f32.mxu0 0.0
    %584 = vmatmul.mubr.f32.gmra.mrb[0].mxu0 %v515
    %v585 = vpop.f32.mrb[0].mxu0
    %v586 = vadd.f32 0.0, %v585
    %v587 = vpop.f32.mrb[0].mxu0
    %588 = vdwg.mxu0
    %590 = vrot.lane.b32.xlu0 %v354, 120
    %v591 = vpop.permute.xlu0 %590
    %v592 = vsel %vm360, %v354, 0
    %v594 = vsel %vm360, %v591, 0
    %596 = vmatprep.subr.mxu0 0.0
    %597 = vmatpush1.xpose.msra.mxu0 %v594
    %598 = vmatprep.subr.mxu0 0.0
    %599 = vmatpush1.xpose.msra.mxu0 0.0
    %600 = vmatprep.subr.mxu0 0.0
    %601 = vmatpush1.xpose.msra.mxu0 0.0
    %602 = vmatprep.subr.mxu0 0.0
    %603 = vmatpush1.xpose.msra.mxu0 0.0
    %604 = vmatprep.subr.mxu0 0.0
    %605 = vmatpush1.xpose.msra.mxu0 0.0
    %606 = vmatprep.subr.mxu0 0.0
    %607 = vmatpush1.xpose.msra.mxu0 0.0
    %608 = vmatprep.subr.mxu0 0.0
    %609 = vmatpush1.xpose.msra.mxu0 0.0
    %610 = vmatprep.subr.mxu0 0.0
    %611 = vmatpush1.xpose.msra.mxu0 0.0
    %612 = vmatprep.subr.mxu0 0.0
    %613 = vmatpush1.xpose.msra.mxu0 0.0
    %614 = vmatprep.subr.mxu0 0.0
    %615 = vmatpush1.xpose.msra.mxu0 0.0
    %616 = vmatprep.subr.mxu0 0.0
    %617 = vmatpush1.xpose.msra.mxu0 0.0
    %618 = vmatprep.subr.mxu0 0.0
    %619 = vmatpush1.xpose.msra.mxu0 0.0
    %620 = vmatprep.subr.mxu0 0.0
    %621 = vmatpush1.xpose.msra.mxu0 0.0
    %622 = vmatprep.subr.mxu0 0.0
    %623 = vmatpush1.xpose.msra.mxu0 0.0
    %624 = vmatprep.subr.mxu0 0.0
    %625 = vmatpush1.xpose.msra.mxu0 0.0
    %626 = vmatprep.subr.mxu0 0.0
    %627 = vmatpush1.xpose.msra.mxu0 0.0
    %628 = vmatprep.subr.mxu0 0.0
    %629 = vmatpush1.xpose.msra.mxu0 0.0
    %630 = vmatprep.subr.mxu0 0.0
    %631 = vmatpush1.xpose.msra.mxu0 0.0
    %632 = vmatprep.subr.mxu0 0.0
    %633 = vmatpush1.xpose.msra.mxu0 0.0
    %634 = vmatprep.subr.mxu0 0.0
    %635 = vmatpush1.xpose.msra.mxu0 0.0
    %636 = vmatprep.subr.mxu0 0.0
    %637 = vmatpush1.xpose.msra.mxu0 0.0
    %638 = vmatprep.subr.mxu0 0.0
    %639 = vmatpush1.xpose.msra.mxu0 0.0
    %640 = vmatprep.subr.mxu0 0.0
    %641 = vmatpush1.xpose.msra.mxu0 0.0
    %642 = vmatprep.subr.mxu0 0.0
    %643 = vmatpush1.xpose.msra.mxu0 0.0
    %644 = vmatprep.subr.mxu0 0.0
    %645 = vmatpush1.xpose.msra.mxu0 0.0
    %646 = vmatprep.subr.mxu0 0.0
    %647 = vmatpush1.xpose.msra.mxu0 0.0
    %648 = vmatprep.subr.mxu0 0.0
    %649 = vmatpush1.xpose.msra.mxu0 0.0
    %650 = vmatprep.subr.mxu0 0.0
    %651 = vmatpush1.xpose.msra.mxu0 0.0
    %652 = vmatprep.subr.mxu0 0.0
    %653 = vmatpush1.xpose.msra.mxu0 0.0
    %654 = vmatprep.subr.mxu0 0.0
    %655 = vmatpush1.xpose.msra.mxu0 0.0
    %656 = vmatprep.subr.mxu0 0.0
    %657 = vmatpush1.xpose.msra.mxu0 0.0
    %658 = vmatprep.subr.mxu0 0.0
    %659 = vmatpush1.xpose.msra.mxu0 0.0
    %660 = vmatprep.mubr.f32.mxu0 0.0
    %661 = vmatmul.mubr.f32.gmra.mrb[0].mxu0 %v592
    %v662 = vpop.f32.mrb[0].mxu0
    %v663 = vadd.f32 0.0, %v662
    %v664 = vpop.f32.mrb[0].mxu0
    %665 = vdwg.mxu0
    %v666 = vsel %vm47, 1, 0
    %vm667 = vcmp.eq.s32.totalorder %v666, 1
    %v668 = vsel %vm667, -inf, %v432
    %v669 = vsel %vm667, -inf, %v509
    %v670 = vsel %vm667, -inf, %v586
    %v671 = vsel %vm667, -inf, %v663
    %v672 = vsel %vm360, %v668, -inf
    %673 = vmax.xlane.f32.xlu0 %v672
    %v674 = vpop.xlane.xlu0 %673
    %v675 = vsel %vm360, %v669, -inf
    %676 = vmax.xlane.f32.xlu0 %v675
    %v677 = vpop.xlane.xlu0 %676
    %v678 = vsel %vm360, %v670, -inf
    %679 = vmax.xlane.f32.xlu0 %v678
    %v680 = vpop.xlane.xlu0 %679
    %v681 = vsel %vm360, %v671, -inf
    %682 = vmax.xlane.f32.xlu0 %v681
    %v683 = vpop.xlane.xlu0 %682
    %v684 = vsub.f32 %v668, %v674
    %v685 = vsub.f32 %v669, %v677
    %v686 = vsub.f32 %v670, %v680
    %v687 = vsub.f32 %v671, %v683
    %v688 = vmul.f32 %v684, 1.442695
    %v689 = vpow.pop %v688
    %v690 = vmul.f32 %v685, 1.442695
    %v691 = vpow.pop %v690
    %v692 = vmul.f32 %v686, 1.442695
    %v693 = vpow.pop %v692
    %v694 = vmul.f32 %v687, 1.442695
    %v695 = vpow.pop %v694
    %v696 = vsel %vm360, %v689, 0.0
    %697 = vadd.xlane.f32.xlu0 %v696
    %v698 = vpop.xlane.xlu0 %697
    %v699 = vsel %vm360, %v691, 0.0
    %700 = vadd.xlane.f32.xlu0 %v699
    %v701 = vpop.xlane.xlu0 %700
    %v702 = vsel %vm360, %v693, 0.0
    %703 = vadd.xlane.f32.xlu0 %v702
    %v704 = vpop.xlane.xlu0 %703
    %v705 = vsel %vm360, %v695, 0.0
    %706 = vadd.xlane.f32.xlu0 %v705
    %v707 = vpop.xlane.xlu0 %706
    %v708 = vrcp.pop %v698
    %v709 = vrcp.pop %v701
    %v710 = vrcp.pop %v704
    %v711 = vrcp.pop %v707
    %v712 = vmul.f32 %v689, %v708
    %v713 = vmul.f32 %v691, %v709
    %v714 = vmul.f32 %v693, %v710
    %v715 = vmul.f32 %v695, %v711
    %716 = vrot.lane.b32.xlu0 %v144, 112
    %v717 = vpop.permute.xlu0 %716
    %v720 = vsel %vm360, %v712, 0
    %722 = vmatprep.subr.mxu0 0.0
    %723 = vmatpush1.msra.mxu0 %v717
    %724 = vmatprep.subr.mxu0 0.0
    %725 = vmatpush1.msra.mxu0 0.0
    %726 = vmatprep.subr.mxu0 0.0
    %727 = vmatpush1.msra.mxu0 0.0
    %728 = vmatprep.subr.mxu0 0.0
    %729 = vmatpush1.msra.mxu0 0.0
    %730 = vmatprep.subr.mxu0 0.0
    %731 = vmatpush1.msra.mxu0 0.0
    %732 = vmatprep.subr.mxu0 0.0
    %733 = vmatpush1.msra.mxu0 0.0
    %734 = vmatprep.subr.mxu0 0.0
    %735 = vmatpush1.msra.mxu0 0.0
    %736 = vmatprep.subr.mxu0 0.0
    %737 = vmatpush1.msra.mxu0 0.0
    %738 = vmatprep.subr.mxu0 0.0
    %739 = vmatpush1.msra.mxu0 0.0
    %740 = vmatprep.subr.mxu0 0.0
    %741 = vmatpush1.msra.mxu0 0.0
    %742 = vmatprep.subr.mxu0 0.0
    %743 = vmatpush1.msra.mxu0 0.0
    %744 = vmatprep.subr.mxu0 0.0
    %745 = vmatpush1.msra.mxu0 0.0
    %746 = vmatprep.subr.mxu0 0.0
    %747 = vmatpush1.msra.mxu0 0.0
    %748 = vmatprep.subr.mxu0 0.0
    %749 = vmatpush1.msra.mxu0 0.0
    %750 = vmatprep.subr.mxu0 0.0
    %751 = vmatpush1.msra.mxu0 0.0
    %752 = vmatprep.subr.mxu0 0.0
    %753 = vmatpush1.msra.mxu0 0.0
    %754 = vmatprep.subr.mxu0 0.0
    %755 = vmatpush1.msra.mxu0 0.0
    %756 = vmatprep.subr.mxu0 0.0
    %757 = vmatpush1.msra.mxu0 0.0
    %758 = vmatprep.subr.mxu0 0.0
    %759 = vmatpush1.msra.mxu0 0.0
    %760 = vmatprep.subr.mxu0 0.0
    %761 = vmatpush1.msra.mxu0 0.0
    %762 = vmatprep.subr.mxu0 0.0
    %763 = vmatpush1.msra.mxu0 0.0
    %764 = vmatprep.subr.mxu0 0.0
    %765 = vmatpush1.msra.mxu0 0.0
    %766 = vmatprep.subr.mxu0 0.0
    %767 = vmatpush1.msra.mxu0 0.0
    %768 = vmatprep.subr.mxu0 0.0
    %769 = vmatpush1.msra.mxu0 0.0
    %770 = vmatprep.subr.mxu0 0.0
    %771 = vmatpush1.msra.mxu0 0.0
    %772 = vmatprep.subr.mxu0 0.0
    %773 = vmatpush1.msra.mxu0 0.0
    %774 = vmatprep.subr.mxu0 0.0
    %775 = vmatpush1.msra.mxu0 0.0
    %776 = vmatprep.subr.mxu0 0.0
    %777 = vmatpush1.msra.mxu0 0.0
    %778 = vmatprep.subr.mxu0 0.0
    %779 = vmatpush1.msra.mxu0 0.0
    %780 = vmatprep.subr.mxu0 0.0
    %781 = vmatpush1.msra.mxu0 0.0
    %782 = vmatprep.subr.mxu0 0.0
    %783 = vmatpush1.msra.mxu0 0.0
    %784 = vmatprep.subr.mxu0 0.0
    %785 = vmatpush1.msra.mxu0 0.0
    %786 = vmatprep.mubr.f32.mxu0 0.0
    %787 = vmatmul.mubr.f32.gmra.mrb[0].mxu0 %v720
    %v788 = vpop.f32.mrb[0].mxu0
    %v789 = vadd.f32 0.0, %v788
    %v790 = vpop.f32.mrb[0].mxu0
    %791 = vdwg.mxu0
    %792 = vrot.lane.b32.xlu0 %v214, 112
    %v793 = vpop.permute.xlu0 %792
    %v796 = vsel %vm360, %v713, 0
    %798 = vmatprep.subr.mxu0 0.0
    %799 = vmatpush1.msra.mxu0 %v793
    %800 = vmatprep.subr.mxu0 0.0
    %801 = vmatpush1.msra.mxu0 0.0
    %802 = vmatprep.subr.mxu0 0.0
    %803 = vmatpush1.msra.mxu0 0.0
    %804 = vmatprep.subr.mxu0 0.0
    %805 = vmatpush1.msra.mxu0 0.0
    %806 = vmatprep.subr.mxu0 0.0
    %807 = vmatpush1.msra.mxu0 0.0
    %808 = vmatprep.subr.mxu0 0.0
    %809 = vmatpush1.msra.mxu0 0.0
    %810 = vmatprep.subr.mxu0 0.0
    %811 = vmatpush1.msra.mxu0 0.0
    %812 = vmatprep.subr.mxu0 0.0
    %813 = vmatpush1.msra.mxu0 0.0
    %814 = vmatprep.subr.mxu0 0.0
    %815 = vmatpush1.msra.mxu0 0.0
    %816 = vmatprep.subr.mxu0 0.0
    %817 = vmatpush1.msra.mxu0 0.0
    %818 = vmatprep.subr.mxu0 0.0
    %819 = vmatpush1.msra.mxu0 0.0
    %820 = vmatprep.subr.mxu0 0.0
    %821 = vmatpush1.msra.mxu0 0.0
    %822 = vmatprep.subr.mxu0 0.0
    %823 = vmatpush1.msra.mxu0 0.0
    %824 = vmatprep.subr.mxu0 0.0
    %825 = vmatpush1.msra.mxu0 0.0
    %826 = vmatprep.subr.mxu0 0.0
    %827 = vmatpush1.msra.mxu0 0.0
    %828 = vmatprep.subr.mxu0 0.0
    %829 = vmatpush1.msra.mxu0 0.0
    %830 = vmatprep.subr.mxu0 0.0
    %831 = vmatpush1.msra.mxu0 0.0
    %832 = vmatprep.subr.mxu0 0.0
    %833 = vmatpush1.msra.mxu0 0.0
    %834 = vmatprep.subr.mxu0 0.0
    %835 = vmatpush1.msra.mxu0 0.0
    %836 = vmatprep.subr.mxu0 0.0
    %837 = vmatpush1.msra.mxu0 0.0
    %838 = vmatprep.subr.mxu0 0.0
    %839 = vmatpush1.msra.mxu0 0.0
    %840 = vmatprep.subr.mxu0 0.0
    %841 = vmatpush1.msra.mxu0 0.0
    %842 = vmatprep.subr.mxu0 0.0
    %843 = vmatpush1.msra.mxu0 0.0
    %844 = vmatprep.subr.mxu0 0.0
    %845 = vmatpush1.msra.mxu0 0.0
    %846 = vmatprep.subr.mxu0 0.0
    %847 = vmatpush1.msra.mxu0 0.0
    %848 = vmatprep.subr.mxu0 0.0
    %849 = vmatpush1.msra.mxu0 0.0
    %850 = vmatprep.subr.mxu0 0.0
    %851 = vmatpush1.msra.mxu0 0.0
    %852 = vmatprep.subr.mxu0 0.0
    %853 = vmatpush1.msra.mxu0 0.0
    %854 = vmatprep.subr.mxu0 0.0
    %855 = vmatpush1.msra.mxu0 0.0
    %856 = vmatprep.subr.mxu0 0.0
    %857 = vmatpush1.msra.mxu0 0.0
    %858 = vmatprep.subr.mxu0 0.0
    %859 = vmatpush1.msra.mxu0 0.0
    %860 = vmatprep.subr.mxu0 0.0
    %861 = vmatpush1.msra.mxu0 0.0
    %862 = vmatprep.mubr.f32.mxu0 0.0
    %863 = vmatmul.mubr.f32.gmra.mrb[0].mxu0 %v796
    %v864 = vpop.f32.mrb[0].mxu0
    %v865 = vadd.f32 0.0, %v864
    %v866 = vpop.f32.mrb[0].mxu0
    %867 = vdwg.mxu0
    %868 = vrot.lane.b32.xlu0 %v284, 112
    %v869 = vpop.permute.xlu0 %868
    %v872 = vsel %vm360, %v714, 0
    %874 = vmatprep.subr.mxu0 0.0
    %875 = vmatpush1.msra.mxu0 %v869
    %876 = vmatprep.subr.mxu0 0.0
    %877 = vmatpush1.msra.mxu0 0.0
    %878 = vmatprep.subr.mxu0 0.0
    %879 = vmatpush1.msra.mxu0 0.0
    %880 = vmatprep.subr.mxu0 0.0
    %881 = vmatpush1.msra.mxu0 0.0
    %882 = vmatprep.subr.mxu0 0.0
    %883 = vmatpush1.msra.mxu0 0.0
    %884 = vmatprep.subr.mxu0 0.0
    %885 = vmatpush1.msra.mxu0 0.0
    %886 = vmatprep.subr.mxu0 0.0
    %887 = vmatpush1.msra.mxu0 0.0
    %888 = vmatprep.subr.mxu0 0.0
    %889 = vmatpush1.msra.mxu0 0.0
    %890 = vmatprep.subr.mxu0 0.0
    %891 = vmatpush1.msra.mxu0 0.0
    %892 = vmatprep.subr.mxu0 0.0
    %893 = vmatpush1.msra.mxu0 0.0
    %894 = vmatprep.subr.mxu0 0.0
    %895 = vmatpush1.msra.mxu0 0.0
    %896 = vmatprep.subr.mxu0 0.0
    %897 = vmatpush1.msra.mxu0 0.0
    %898 = vmatprep.subr.mxu0 0.0
    %899 = vmatpush1.msra.mxu0 0.0
    %900 = vmatprep.subr.mxu0 0.0
    %901 = vmatpush1.msra.mxu0 0.0
    %902 = vmatprep.subr.mxu0 0.0
    %903 = vmatpush1.msra.mxu0 0.0
    %904 = vmatprep.subr.mxu0 0.0
    %905 = vmatpush1.msra.mxu0 0.0
    %906 = vmatprep.subr.mxu0 0.0
    %907 = vmatpush1.msra.mxu0 0.0
    %908 = vmatprep.subr.mxu0 0.0
    %909 = vmatpush1.msra.mxu0 0.0
    %910 = vmatprep.subr.mxu0 0.0
    %911 = vmatpush1.msra.mxu0 0.0
    %912 = vmatprep.subr.mxu0 0.0
    %913 = vmatpush1.msra.mxu0 0.0
    %914 = vmatprep.subr.mxu0 0.0
    %915 = vmatpush1.msra.mxu0 0.0
    %916 = vmatprep.subr.mxu0 0.0
    %917 = vmatpush1.msra.mxu0 0.0
    %918 = vmatprep.subr.mxu0 0.0
    %919 = vmatpush1.msra.mxu0 0.0
    %920 = vmatprep.subr.mxu0 0.0
    %921 = vmatpush1.msra.mxu0 0.0
    %922 = vmatprep.subr.mxu0 0.0
    %923 = vmatpush1.msra.mxu0 0.0
    %924 = vmatprep.subr.mxu0 0.0
    %925 = vmatpush1.msra.mxu0 0.0
    %926 = vmatprep.subr.mxu0 0.0
    %927 = vmatpush1.msra.mxu0 0.0
    %928 = vmatprep.subr.mxu0 0.0
    %929 = vmatpush1.msra.mxu0 0.0
    %930 = vmatprep.subr.mxu0 0.0
    %931 = vmatpush1.msra.mxu0 0.0
    %932 = vmatprep.subr.mxu0 0.0
    %933 = vmatpush1.msra.mxu0 0.0
    %934 = vmatprep.subr.mxu0 0.0
    %935 = vmatpush1.msra.mxu0 0.0
    %936 = vmatprep.subr.mxu0 0.0
    %937 = vmatpush1.msra.mxu0 0.0
    %938 = vmatprep.mubr.f32.mxu0 0.0
    %939 = vmatmul.mubr.f32.gmra.mrb[0].mxu0 %v872
    %v940 = vpop.f32.mrb[0].mxu0
    %v941 = vadd.f32 0.0, %v940
    %v942 = vpop.f32.mrb[0].mxu0
    %943 = vdwg.mxu0
    %944 = vrot.lane.b32.xlu0 %v354, 112
    %v945 = vpop.permute.xlu0 %944
    %v948 = vsel %vm360, %v715, 0
    %950 = vmatprep.subr.mxu0 0.0
    %951 = vmatpush1.msra.mxu0 %v945
    %952 = vmatprep.subr.mxu0 0.0
    %953 = vmatpush1.msra.mxu0 0.0
    %954 = vmatprep.subr.mxu0 0.0
    %955 = vmatpush1.msra.mxu0 0.0
    %956 = vmatprep.subr.mxu0 0.0
    %957 = vmatpush1.msra.mxu0 0.0
    %958 = vmatprep.subr.mxu0 0.0
    %959 = vmatpush1.msra.mxu0 0.0
    %960 = vmatprep.subr.mxu0 0.0
    %961 = vmatpush1.msra.mxu0 0.0
    %962 = vmatprep.subr.mxu0 0.0
    %963 = vmatpush1.msra.mxu0 0.0
    %964 = vmatprep.subr.mxu0 0.0
    %965 = vmatpush1.msra.mxu0 0.0
    %966 = vmatprep.subr.mxu0 0.0
    %967 = vmatpush1.msra.mxu0 0.0
    %968 = vmatprep.subr.mxu0 0.0
    %969 = vmatpush1.msra.mxu0 0.0
    %970 = vmatprep.subr.mxu0 0.0
    %971 = vmatpush1.msra.mxu0 0.0
    %972 = vmatprep.subr.mxu0 0.0
    %973 = vmatpush1.msra.mxu0 0.0
    %974 = vmatprep.subr.mxu0 0.0
    %975 = vmatpush1.msra.mxu0 0.0
    %976 = vmatprep.subr.mxu0 0.0
    %977 = vmatpush1.msra.mxu0 0.0
    %978 = vmatprep.subr.mxu0 0.0
    %979 = vmatpush1.msra.mxu0 0.0
    %980 = vmatprep.subr.mxu0 0.0
    %981 = vmatpush1.msra.mxu0 0.0
    %982 = vmatprep.subr.mxu0 0.0
    %983 = vmatpush1.msra.mxu0 0.0
    %984 = vmatprep.subr.mxu0 0.0
    %985 = vmatpush1.msra.mxu0 0.0
    %986 = vmatprep.subr.mxu0 0.0
    %987 = vmatpush1.msra.mxu0 0.0
    %988 = vmatprep.subr.mxu0 0.0
    %989 = vmatpush1.msra.mxu0 0.0
    %990 = vmatprep.subr.mxu0 0.0
    %991 = vmatpush1.msra.mxu0 0.0
    %992 = vmatprep.subr.mxu0 0.0
    %993 = vmatpush1.msra.mxu0 0.0
    %994 = vmatprep.subr.mxu0 0.0
    %995 = vmatpush1.msra.mxu0 0.0
    %996 = vmatprep.subr.mxu0 0.0
    %997 = vmatpush1.msra.mxu0 0.0
    %998 = vmatprep.subr.mxu0 0.0
    %999 = vmatpush1.msra.mxu0 0.0
    %1000 = vmatprep.subr.mxu0 0.0
    %1001 = vmatpush1.msra.mxu0 0.0
    %1002 = vmatprep.subr.mxu0 0.0
    %1003 = vmatpush1.msra.mxu0 0.0
    %1004 = vmatprep.subr.mxu0 0.0
    %1005 = vmatpush1.msra.mxu0 0.0
    %1006 = vmatprep.subr.mxu0 0.0
    %1007 = vmatpush1.msra.mxu0 0.0
    %1008 = vmatprep.subr.mxu0 0.0
    %1009 = vmatpush1.msra.mxu0 0.0
    %1010 = vmatprep.subr.mxu0 0.0
    %1011 = vmatpush1.msra.mxu0 0.0
    %1012 = vmatprep.subr.mxu0 0.0
    %1013 = vmatpush1.msra.mxu0 0.0
    %1014 = vmatprep.mubr.f32.mxu0 0.0
    %1015 = vmatmul.mubr.f32.gmra.mrb[0].mxu0 %v948
    %v1016 = vpop.f32.mrb[0].mxu0
    %v1017 = vadd.f32 0.0, %v1016
    %v1018 = vpop.f32.mrb[0].mxu0
    %1019 = vdwg.mxu0
    %v1021 = vsel %vm360, %v789, 0
    %1023 = vmatprep.subr.mxu0 0.0
    %1024 = vmatpush1.msra.mxu0 %v39
    %1025 = vmatprep.subr.mxu0 0.0
    %1026 = vmatpush1.msra.mxu0 0.0
    %1027 = vmatprep.subr.mxu0 0.0
    %1028 = vmatpush1.msra.mxu0 0.0
    %1029 = vmatprep.subr.mxu0 0.0
    %1030 = vmatpush1.msra.mxu0 0.0
    %1031 = vmatprep.subr.mxu0 0.0
    %1032 = vmatpush1.msra.mxu0 0.0
    %1033 = vmatprep.subr.mxu0 0.0
    %1034 = vmatpush1.msra.mxu0 0.0
    %1035 = vmatprep.subr.mxu0 0.0
    %1036 = vmatpush1.msra.mxu0 0.0
    %1037 = vmatprep.subr.mxu0 0.0
    %1038 = vmatpush1.msra.mxu0 0.0
    %1039 = vmatprep.subr.mxu0 0.0
    %1040 = vmatpush1.msra.mxu0 0.0
    %1041 = vmatprep.subr.mxu0 0.0
    %1042 = vmatpush1.msra.mxu0 0.0
    %1043 = vmatprep.subr.mxu0 0.0
    %1044 = vmatpush1.msra.mxu0 0.0
    %1045 = vmatprep.subr.mxu0 0.0
    %1046 = vmatpush1.msra.mxu0 0.0
    %1047 = vmatprep.subr.mxu0 0.0
    %1048 = vmatpush1.msra.mxu0 0.0
    %1049 = vmatprep.subr.mxu0 0.0
    %1050 = vmatpush1.msra.mxu0 0.0
    %1051 = vmatprep.subr.mxu0 0.0
    %1052 = vmatpush1.msra.mxu0 0.0
    %1053 = vmatprep.subr.mxu0 0.0
    %1054 = vmatpush1.msra.mxu0 0.0
    %1055 = vmatprep.subr.mxu0 0.0
    %1056 = vmatpush1.msra.mxu0 0.0
    %1057 = vmatprep.subr.mxu0 0.0
    %1058 = vmatpush1.msra.mxu0 0.0
    %1059 = vmatprep.subr.mxu0 0.0
    %1060 = vmatpush1.msra.mxu0 0.0
    %1061 = vmatprep.subr.mxu0 0.0
    %1062 = vmatpush1.msra.mxu0 0.0
    %1063 = vmatprep.subr.mxu0 0.0
    %1064 = vmatpush1.msra.mxu0 0.0
    %1065 = vmatprep.subr.mxu0 0.0
    %1066 = vmatpush1.msra.mxu0 0.0
    %1067 = vmatprep.subr.mxu0 0.0
    %1068 = vmatpush1.msra.mxu0 0.0
    %1069 = vmatprep.subr.mxu0 0.0
    %1070 = vmatpush1.msra.mxu0 0.0
    %1071 = vmatprep.subr.mxu0 0.0
    %1072 = vmatpush1.msra.mxu0 0.0
    %1073 = vmatprep.subr.mxu0 0.0
    %1074 = vmatpush1.msra.mxu0 0.0
    %1075 = vmatprep.subr.mxu0 0.0
    %1076 = vmatpush1.msra.mxu0 0.0
    %1077 = vmatprep.subr.mxu0 0.0
    %1078 = vmatpush1.msra.mxu0 0.0
    %1079 = vmatprep.subr.mxu0 0.0
    %1080 = vmatpush1.msra.mxu0 0.0
    %1081 = vmatprep.subr.mxu0 0.0
    %1082 = vmatpush1.msra.mxu0 0.0
    %1083 = vmatprep.subr.mxu0 0.0
    %1084 = vmatpush1.msra.mxu0 0.0
    %1085 = vmatprep.subr.mxu0 0.0
    %1086 = vmatpush1.msra.mxu0 0.0
    %1087 = vmatprep.mubr.f32.mxu0 0.0
    %1088 = vmatmul.mubr.f32.gmra.mrb[0].mxu0 %v1021
    %v1089 = vpop.f32.mrb[0].mxu0
    %v1090 = vadd.f32 0.0, %v1089
    %v1091 = vpop.f32.mrb[0].mxu0
    %1092 = vdwg.mxu0
    %v1094 = vsel %vm360, %v865, 0
    %1096 = vmatprep.subr.mxu0 0.0
    %1097 = vmatpush1.msra.mxu0 %v40
    %1098 = vmatprep.subr.mxu0 0.0
    %1099 = vmatpush1.msra.mxu0 0.0
    %1100 = vmatprep.subr.mxu0 0.0
    %1101 = vmatpush1.msra.mxu0 0.0
    %1102 = vmatprep.subr.mxu0 0.0
    %1103 = vmatpush1.msra.mxu0 0.0
    %1104 = vmatprep.subr.mxu0 0.0
    %1105 = vmatpush1.msra.mxu0 0.0
    %1106 = vmatprep.subr.mxu0 0.0
    %1107 = vmatpush1.msra.mxu0 0.0
    %1108 = vmatprep.subr.mxu0 0.0
    %1109 = vmatpush1.msra.mxu0 0.0
    %1110 = vmatprep.subr.mxu0 0.0
    %1111 = vmatpush1.msra.mxu0 0.0
    %1112 = vmatprep.subr.mxu0 0.0
    %1113 = vmatpush1.msra.mxu0 0.0
    %1114 = vmatprep.subr.mxu0 0.0
    %1115 = vmatpush1.msra.mxu0 0.0
    %1116 = vmatprep.subr.mxu0 0.0
    %1117 = vmatpush1.msra.mxu0 0.0
    %1118 = vmatprep.subr.mxu0 0.0
    %1119 = vmatpush1.msra.mxu0 0.0
    %1120 = vmatprep.subr.mxu0 0.0
    %1121 = vmatpush1.msra.mxu0 0.0
    %1122 = vmatprep.subr.mxu0 0.0
    %1123 = vmatpush1.msra.mxu0 0.0
    %1124 = vmatprep.subr.mxu0 0.0
    %1125 = vmatpush1.msra.mxu0 0.0
    %1126 = vmatprep.subr.mxu0 0.0
    %1127 = vmatpush1.msra.mxu0 0.0
    %1128 = vmatprep.subr.mxu0 0.0
    %1129 = vmatpush1.msra.mxu0 0.0
    %1130 = vmatprep.subr.mxu0 0.0
    %1131 = vmatpush1.msra.mxu0 0.0
    %1132 = vmatprep.subr.mxu0 0.0
    %1133 = vmatpush1.msra.mxu0 0.0
    %1134 = vmatprep.subr.mxu0 0.0
    %1135 = vmatpush1.msra.mxu0 0.0
    %1136 = vmatprep.subr.mxu0 0.0
    %1137 = vmatpush1.msra.mxu0 0.0
    %1138 = vmatprep.subr.mxu0 0.0
    %1139 = vmatpush1.msra.mxu0 0.0
    %1140 = vmatprep.subr.mxu0 0.0
    %1141 = vmatpush1.msra.mxu0 0.0
    %1142 = vmatprep.subr.mxu0 0.0
    %1143 = vmatpush1.msra.mxu0 0.0
    %1144 = vmatprep.subr.mxu0 0.0
    %1145 = vmatpush1.msra.mxu0 0.0
    %1146 = vmatprep.subr.mxu0 0.0
    %1147 = vmatpush1.msra.mxu0 0.0
    %1148 = vmatprep.subr.mxu0 0.0
    %1149 = vmatpush1.msra.mxu0 0.0
    %1150 = vmatprep.subr.mxu0 0.0
    %1151 = vmatpush1.msra.mxu0 0.0
    %1152 = vmatprep.subr.mxu0 0.0
    %1153 = vmatpush1.msra.mxu0 0.0
    %1154 = vmatprep.subr.mxu0 0.0
    %1155 = vmatpush1.msra.mxu0 0.0
    %1156 = vmatprep.subr.mxu0 0.0
    %1157 = vmatpush1.msra.mxu0 0.0
    %1158 = vmatprep.subr.mxu0 0.0
    %1159 = vmatpush1.msra.mxu0 0.0
    %1160 = vmatprep.mubr.f32.mxu0 0.0
    %1161 = vmatmul.mubr.f32.gmra.mrb[0].mxu0 %v1094
    %v1162 = vpop.f32.mrb[0].mxu0
    %v1163 = vadd.f32 0.0, %v1162
    %v1164 = vpop.f32.mrb[0].mxu0
    %1165 = vdwg.mxu0
    %v1167 = vsel %vm360, %v941, 0
    %1169 = vmatprep.subr.mxu0 0.0
    %1170 = vmatpush1.msra.mxu0 %v41
    %1171 = vmatprep.subr.mxu0 0.0
    %1172 = vmatpush1.msra.mxu0 0.0
    %1173 = vmatprep.subr.mxu0 0.0
    %1174 = vmatpush1.msra.mxu0 0.0
    %1175 = vmatprep.subr.mxu0 0.0
    %1176 = vmatpush1.msra.mxu0 0.0
    %1177 = vmatprep.subr.mxu0 0.0
    %1178 = vmatpush1.msra.mxu0 0.0
    %1179 = vmatprep.subr.mxu0 0.0
    %1180 = vmatpush1.msra.mxu0 0.0
    %1181 = vmatprep.subr.mxu0 0.0
    %1182 = vmatpush1.msra.mxu0 0.0
    %1183 = vmatprep.subr.mxu0 0.0
    %1184 = vmatpush1.msra.mxu0 0.0
    %1185 = vmatprep.subr.mxu0 0.0
    %1186 = vmatpush1.msra.mxu0 0.0
    %1187 = vmatprep.subr.mxu0 0.0
    %1188 = vmatpush1.msra.mxu0 0.0
    %1189 = vmatprep.subr.mxu0 0.0
    %1190 = vmatpush1.msra.mxu0 0.0
    %1191 = vmatprep.subr.mxu0 0.0
    %1192 = vmatpush1.msra.mxu0 0.0
    %1193 = vmatprep.subr.mxu0 0.0
    %1194 = vmatpush1.msra.mxu0 0.0
    %1195 = vmatprep.subr.mxu0 0.0
    %1196 = vmatpush1.msra.mxu0 0.0
    %1197 = vmatprep.subr.mxu0 0.0
    %1198 = vmatpush1.msra.mxu0 0.0
    %1199 = vmatprep.subr.mxu0 0.0
    %1200 = vmatpush1.msra.mxu0 0.0
    %1201 = vmatprep.subr.mxu0 0.0
    %1202 = vmatpush1.msra.mxu0 0.0
    %1203 = vmatprep.subr.mxu0 0.0
    %1204 = vmatpush1.msra.mxu0 0.0
    %1205 = vmatprep.subr.mxu0 0.0
    %1206 = vmatpush1.msra.mxu0 0.0
    %1207 = vmatprep.subr.mxu0 0.0
    %1208 = vmatpush1.msra.mxu0 0.0
    %1209 = vmatprep.subr.mxu0 0.0
    %1210 = vmatpush1.msra.mxu0 0.0
    %1211 = vmatprep.subr.mxu0 0.0
    %1212 = vmatpush1.msra.mxu0 0.0
    %1213 = vmatprep.subr.mxu0 0.0
    %1214 = vmatpush1.msra.mxu0 0.0
    %1215 = vmatprep.subr.mxu0 0.0
    %1216 = vmatpush1.msra.mxu0 0.0
    %1217 = vmatprep.subr.mxu0 0.0
    %1218 = vmatpush1.msra.mxu0 0.0
    %1219 = vmatprep.subr.mxu0 0.0
    %1220 = vmatpush1.msra.mxu0 0.0
    %1221 = vmatprep.subr.mxu0 0.0
    %1222 = vmatpush1.msra.mxu0 0.0
    %1223 = vmatprep.subr.mxu0 0.0
    %1224 = vmatpush1.msra.mxu0 0.0
    %1225 = vmatprep.subr.mxu0 0.0
    %1226 = vmatpush1.msra.mxu0 0.0
    %1227 = vmatprep.subr.mxu0 0.0
    %1228 = vmatpush1.msra.mxu0 0.0
    %1229 = vmatprep.subr.mxu0 0.0
    %1230 = vmatpush1.msra.mxu0 0.0
    %1231 = vmatprep.subr.mxu0 0.0
    %1232 = vmatpush1.msra.mxu0 0.0
    %1233 = vmatprep.mubr.f32.mxu0 0.0
    %1234 = vmatmul.mubr.f32.gmra.mrb[0].mxu0 %v1167
    %v1235 = vpop.f32.mrb[0].mxu0
    %v1236 = vadd.f32 0.0, %v1235
    %v1237 = vpop.f32.mrb[0].mxu0
    %1238 = vdwg.mxu0
    %v1240 = vsel %vm360, %v1017, 0
    %1242 = vmatprep.subr.mxu0 0.0
    %1243 = vmatpush1.msra.mxu0 %v42
    %1244 = vmatprep.subr.mxu0 0.0
    %1245 = vmatpush1.msra.mxu0 0.0
    %1246 = vmatprep.subr.mxu0 0.0
    %1247 = vmatpush1.msra.mxu0 0.0
    %1248 = vmatprep.subr.mxu0 0.0
    %1249 = vmatpush1.msra.mxu0 0.0
    %1250 = vmatprep.subr.mxu0 0.0
    %1251 = vmatpush1.msra.mxu0 0.0
    %1252 = vmatprep.subr.mxu0 0.0
    %1253 = vmatpush1.msra.mxu0 0.0
    %1254 = vmatprep.subr.mxu0 0.0
    %1255 = vmatpush1.msra.mxu0 0.0
    %1256 = vmatprep.subr.mxu0 0.0
    %1257 = vmatpush1.msra.mxu0 0.0
    %1258 = vmatprep.subr.mxu0 0.0
    %1259 = vmatpush1.msra.mxu0 0.0
    %1260 = vmatprep.subr.mxu0 0.0
    %1261 = vmatpush1.msra.mxu0 0.0
    %1262 = vmatprep.subr.mxu0 0.0
    %1263 = vmatpush1.msra.mxu0 0.0
    %1264 = vmatprep.subr.mxu0 0.0
    %1265 = vmatpush1.msra.mxu0 0.0
    %1266 = vmatprep.subr.mxu0 0.0
    %1267 = vmatpush1.msra.mxu0 0.0
    %1268 = vmatprep.subr.mxu0 0.0
    %1269 = vmatpush1.msra.mxu0 0.0
    %1270 = vmatprep.subr.mxu0 0.0
    %1271 = vmatpush1.msra.mxu0 0.0
    %1272 = vmatprep.subr.mxu0 0.0
    %1273 = vmatpush1.msra.mxu0 0.0
    %1274 = vmatprep.subr.mxu0 0.0
    %1275 = vmatpush1.msra.mxu0 0.0
    %1276 = vmatprep.subr.mxu0 0.0
    %1277 = vmatpush1.msra.mxu0 0.0
    %1278 = vmatprep.subr.mxu0 0.0
    %1279 = vmatpush1.msra.mxu0 0.0
    %1280 = vmatprep.subr.mxu0 0.0
    %1281 = vmatpush1.msra.mxu0 0.0
    %1282 = vmatprep.subr.mxu0 0.0
    %1283 = vmatpush1.msra.mxu0 0.0
    %1284 = vmatprep.subr.mxu0 0.0
    %1285 = vmatpush1.msra.mxu0 0.0
    %1286 = vmatprep.subr.mxu0 0.0
    %1287 = vmatpush1.msra.mxu0 0.0
    %1288 = vmatprep.subr.mxu0 0.0
    %1289 = vmatpush1.msra.mxu0 0.0
    %1290 = vmatprep.subr.mxu0 0.0
    %1291 = vmatpush1.msra.mxu0 0.0
    %1292 = vmatprep.subr.mxu0 0.0
    %1293 = vmatpush1.msra.mxu0 0.0
    %1294 = vmatprep.subr.mxu0 0.0
    %1295 = vmatpush1.msra.mxu0 0.0
    %1296 = vmatprep.subr.mxu0 0.0
    %1297 = vmatpush1.msra.mxu0 0.0
    %1298 = vmatprep.subr.mxu0 0.0
    %1299 = vmatpush1.msra.mxu0 0.0
    %1300 = vmatprep.subr.mxu0 0.0
    %1301 = vmatpush1.msra.mxu0 0.0
    %1302 = vmatprep.subr.mxu0 0.0
    %1303 = vmatpush1.msra.mxu0 0.0
    %1304 = vmatprep.subr.mxu0 0.0
    %1305 = vmatpush1.msra.mxu0 0.0
    %1306 = vmatprep.mubr.f32.mxu0 0.0
    %1307 = vmatmul.mubr.f32.gmra.mrb[0].mxu0 %v1240
    %v1308 = vpop.f32.mrb[0].mxu0
    %v1309 = vadd.f32 0.0, %v1308
    %v1310 = vpop.f32.mrb[0].mxu0
    %1311 = vdwg.mxu0
    %v1312 = vsel %vm49, %v1090, 0.0
    %v1313 = vsel %vm49, %v1163, 0.0
    %v1314 = vadd.f32 %v1312, %v1313
    %v1315 = vsel %vm49, %v1236, 0.0
    %v1316 = vadd.f32 %v1314, %v1315
    %v1317 = vsel %vm49, %v1309, 0.0
    %v1318 = vadd.f32 %v1316, %v1317
    %v1319 = vlaneseq
    %v1320 = vshrl.u32 %v1319, 7
    %v1321 = vsub.s32 0, %v1320
    %v1322 = vrot.slane %v18, %v1321
    %v1323 = vadd.f32 %v1318, %v1322
    %v1324 = vadd.f32 %v48, %v1323
    %v1325 = vsel %vm49, %v1324, 0.0
    %1326 = vadd.xlane.f32.xlu0 %v1325
    %v1327 = vpop.xlane.xlu0 %1326
    %v1328 = vmul.f32 %v1327, %v53
    %v1329 = vsub.f32 %v1324, %v1328
    %v1330 = vmul.f32 %v1329, %v1329
    %v1331 = vsel %vm49, %v1330, 0.0
    %1332 = vadd.xlane.f32.xlu0 %v1331
    %v1333 = vpop.xlane.xlu0 %1332
    %v1334 = vmul.f32 %v1333, %v53
    %v1335 = vadd.f32 %v1334, 1e-05
    %v1336 = vrsqrt.pop %v1335
    %v1337 = vmul.f32 %v1329, %v1336
    %v1338 = vlaneseq
    %v1339 = vshrl.u32 %v1338, 7
    %v1340 = vsub.s32 0, %v1339
    %v1341 = vrot.slane %v21, %v1340
    %v1342 = vmul.f32 %v1341, %v1337
    %v1343 = vlaneseq
    %v1344 = vshrl.u32 %v1343, 7
    %v1345 = vsub.s32 0, %v1344
    %v1346 = vrot.slane %v22, %v1345
    %v1347 = vadd.f32 %v1342, %v1346
    %v1348 = vadd.f32 %v1324, %v1347
    %1349 = vst.msk [vmem:[#allocation2] sm:$0xff] %vm49, %v1348
    %s1350 = scalar_lea.vmem %s0, 8
    %v1351 = vld [vmem:[%s1350] sm:$0xff]
    %v1352 = vsel %vm49, %v1351, 0.0
    %1353 = vadd.xlane.f32.xlu0 %v1352
    %v1354 = vpop.xlane.xlu0 %1353
    %v1355 = vmul.f32 %v1354, %v53
    %v1356 = vsub.f32 %v1351, %v1355
    %v1357 = vmul.f32 %v1356, %v1356
    %v1358 = vsel %vm49, %v1357, 0.0
    %1359 = vadd.xlane.f32.xlu0 %v1358
    %v1360 = vpop.xlane.xlu0 %1359
    %v1361 = vmul.f32 %v1360, %v53
    %v1362 = vadd.f32 %v1361, 1e-05
    %v1363 = vrsqrt.pop %v1362
    %v1364 = vmul.f32 %v1356, %v1363
    %v1365 = vmul.f32 %v67, %v1364
    %v1366 = vadd.f32 %v1365, %v72
    %v1368 = vsel %vm49, %v1366, 0
    %1370 = vmatprep.subr.mxu0 0.0
    %1371 = vmatpush1.msra.mxu0 %v23
    %1372 = vmatprep.subr.mxu0 0.0
    %1373 = vmatpush1.msra.mxu0 %v24
    %1374 = vmatprep.subr.mxu0 0.0
    %1375 = vmatpush1.msra.mxu0 %v25
    %1376 = vmatprep.subr.mxu0 0.0
    %1377 = vmatpush1.msra.mxu0 %v26
    %1378 = vmatprep.subr.mxu0 0.0
    %1379 = vmatpush1.msra.mxu0 0.0
    %1380 = vmatprep.subr.mxu0 0.0
    %1381 = vmatpush1.msra.mxu0 0.0
    %1382 = vmatprep.subr.mxu0 0.0
    %1383 = vmatpush1.msra.mxu0 0.0
    %1384 = vmatprep.subr.mxu0 0.0
    %1385 = vmatpush1.msra.mxu0 0.0
    %1386 = vmatprep.subr.mxu0 0.0
    %1387 = vmatpush1.msra.mxu0 0.0
    %1388 = vmatprep.subr.mxu0 0.0
    %1389 = vmatpush1.msra.mxu0 0.0
    %1390 = vmatprep.subr.mxu0 0.0
    %1391 = vmatpush1.msra.mxu0 0.0
    %1392 = vmatprep.subr.mxu0 0.0
    %1393 = vmatpush1.msra.mxu0 0.0
    %1394 = vmatprep.subr.mxu0 0.0
    %1395 = vmatpush1.msra.mxu0 0.0
    %1396 = vmatprep.subr.mxu0 0.0
    %1397 = vmatpush1.msra.mxu0 0.0
    %1398 = vmatprep.subr.mxu0 0.0
    %1399 = vmatpush1.msra.mxu0 0.0
    %1400 = vmatprep.subr.mxu0 0.0
    %1401 = vmatpush1.msra.mxu0 0.0
    %1402 = vmatprep.subr.mxu0 0.0
    %1403 = vmatpush1.msra.mxu0 0.0
    %1404 = vmatprep.subr.mxu0 0.0
    %1405 = vmatpush1.msra.mxu0 0.0
    %1406 = vmatprep.subr.mxu0 0.0
    %1407 = vmatpush1.msra.mxu0 0.0
    %1408 = vmatprep.subr.mxu0 0.0
    %1409 = vmatpush1.msra.mxu0 0.0
    %1410 = vmatprep.subr.mxu0 0.0
    %1411 = vmatpush1.msra.mxu0 0.0
    %1412 = vmatprep.subr.mxu0 0.0
    %1413 = vmatpush1.msra.mxu0 0.0
    %1414 = vmatprep.subr.mxu0 0.0
    %1415 = vmatpush1.msra.mxu0 0.0
    %1416 = vmatprep.subr.mxu0 0.0
    %1417 = vmatpush1.msra.mxu0 0.0
    %1418 = vmatprep.subr.mxu0 0.0
    %1419 = vmatpush1.msra.mxu0 0.0
    %1420 = vmatprep.subr.mxu0 0.0
    %1421 = vmatpush1.msra.mxu0 0.0
    %1422 = vmatprep.subr.mxu0 0.0
    %1423 = vmatpush1.msra.mxu0 0.0
    %1424 = vmatprep.subr.mxu0 0.0
    %1425 = vmatpush1.msra.mxu0 0.0
    %1426 = vmatprep.subr.mxu0 0.0
    %1427 = vmatpush1.msra.mxu0 0.0
    %1428 = vmatprep.subr.mxu0 0.0
    %1429 = vmatpush1.msra.mxu0 0.0
    %1430 = vmatprep.subr.mxu0 0.0
    %1431 = vmatpush1.msra.mxu0 0.0
    %1432 = vmatprep.subr.mxu0 0.0
    %1433 = vmatpush1.msra.mxu0 0.0
    %1434 = vmatprep.mubr.f32.mxu0 0.0
    %1435 = vmatmul.mubr.f32.gmra.mrb[0].mxu0 %v1368
    %v1436 = vpop.f32.mrb[0].mxu0
    %v1437 = vadd.f32 0.0, %v1436
    %v1438 = vpop.f32.mrb[0].mxu0
    %1439 = vdwg.mxu0
    %1440 = vmatprep.subr.mxu0 0.0
    %1441 = vmatpush1.msra.mxu0 %v27
    %1442 = vmatprep.subr.mxu0 0.0
    %1443 = vmatpush1.msra.mxu0 %v28
    %1444 = vmatprep.subr.mxu0 0.0
    %1445 = vmatpush1.msra.mxu0 %v29
    %1446 = vmatprep.subr.mxu0 0.0
    %1447 = vmatpush1.msra.mxu0 %v30
    %1448 = vmatprep.subr.mxu0 0.0
    %1449 = vmatpush1.msra.mxu0 0.0
    %1450 = vmatprep.subr.mxu0 0.0
    %1451 = vmatpush1.msra.mxu0 0.0
    %1452 = vmatprep.subr.mxu0 0.0
    %1453 = vmatpush1.msra.mxu0 0.0
    %1454 = vmatprep.subr.mxu0 0.0
    %1455 = vmatpush1.msra.mxu0 0.0
    %1456 = vmatprep.subr.mxu0 0.0
    %1457 = vmatpush1.msra.mxu0 0.0
    %1458 = vmatprep.subr.mxu0 0.0
    %1459 = vmatpush1.msra.mxu0 0.0
    %1460 = vmatprep.subr.mxu0 0.0
    %1461 = vmatpush1.msra.mxu0 0.0
    %1462 = vmatprep.subr.mxu0 0.0
    %1463 = vmatpush1.msra.mxu0 0.0
    %1464 = vmatprep.subr.mxu0 0.0
    %1465 = vmatpush1.msra.mxu0 0.0
    %1466 = vmatprep.subr.mxu0 0.0
    %1467 = vmatpush1.msra.mxu0 0.0
    %1468 = vmatprep.subr.mxu0 0.0
    %1469 = vmatpush1.msra.mxu0 0.0
    %1470 = vmatprep.subr.mxu0 0.0
    %1471 = vmatpush1.msra.mxu0 0.0
    %1472 = vmatprep.subr.mxu0 0.0
    %1473 = vmatpush1.msra.mxu0 0.0
    %1474 = vmatprep.subr.mxu0 0.0
    %1475 = vmatpush1.msra.mxu0 0.0
    %1476 = vmatprep.subr.mxu0 0.0
    %1477 = vmatpush1.msra.mxu0 0.0
    %1478 = vmatprep.subr.mxu0 0.0
    %1479 = vmatpush1.msra.mxu0 0.0
    %1480 = vmatprep.subr.mxu0 0.0
    %1481 = vmatpush1.msra.mxu0 0.0
    %1482 = vmatprep.subr.mxu0 0.0
    %1483 = vmatpush1.msra.mxu0 0.0
    %1484 = vmatprep.subr.mxu0 0.0
    %1485 = vmatpush1.msra.mxu0 0.0
    %1486 = vmatprep.subr.mxu0 0.0
    %1487 = vmatpush1.msra.mxu0 0.0
    %1488 = vmatprep.subr.mxu0 0.0
    %1489 = vmatpush1.msra.mxu0 0.0
    %1490 = vmatprep.subr.mxu0 0.0
    %1491 = vmatpush1.msra.mxu0 0.0
    %1492 = vmatprep.subr.mxu0 0.0
    %1493 = vmatpush1.msra.mxu0 0.0
    %1494 = vmatprep.subr.mxu0 0.0
    %1495 = vmatpush1.msra.mxu0 0.0
    %1496 = vmatprep.subr.mxu0 0.0
    %1497 = vmatpush1.msra.mxu0 0.0
    %1498 = vmatprep.subr.mxu0 0.0
    %1499 = vmatpush1.msra.mxu0 0.0
    %1500 = vmatprep.subr.mxu0 0.0
    %1501 = vmatpush1.msra.mxu0 0.0
    %1502 = vmatprep.subr.mxu0 0.0
    %1503 = vmatpush1.msra.mxu0 0.0
    %1504 = vmatprep.mubr.f32.mxu0 0.0
    %1505 = vmatmul.mubr.f32.gmra.mrb[0].mxu0 %v1368
    %v1506 = vpop.f32.mrb[0].mxu0
    %v1507 = vadd.f32 0.0, %v1506
    %v1508 = vpop.f32.mrb[0].mxu0
    %1509 = vdwg.mxu0
    %1510 = vmatprep.subr.mxu0 0.0
    %1511 = vmatpush1.msra.mxu0 %v31
    %1512 = vmatprep.subr.mxu0 0.0
    %1513 = vmatpush1.msra.mxu0 %v32
    %1514 = vmatprep.subr.mxu0 0.0
    %1515 = vmatpush1.msra.mxu0 %v33
    %1516 = vmatprep.subr.mxu0 0.0
    %1517 = vmatpush1.msra.mxu0 %v34
    %1518 = vmatprep.subr.mxu0 0.0
    %1519 = vmatpush1.msra.mxu0 0.0
    %1520 = vmatprep.subr.mxu0 0.0
    %1521 = vmatpush1.msra.mxu0 0.0
    %1522 = vmatprep.subr.mxu0 0.0
    %1523 = vmatpush1.msra.mxu0 0.0
    %1524 = vmatprep.subr.mxu0 0.0
    %1525 = vmatpush1.msra.mxu0 0.0
    %1526 = vmatprep.subr.mxu0 0.0
    %1527 = vmatpush1.msra.mxu0 0.0
    %1528 = vmatprep.subr.mxu0 0.0
    %1529 = vmatpush1.msra.mxu0 0.0
    %1530 = vmatprep.subr.mxu0 0.0
    %1531 = vmatpush1.msra.mxu0 0.0
    %1532 = vmatprep.subr.mxu0 0.0
    %1533 = vmatpush1.msra.mxu0 0.0
    %1534 = vmatprep.subr.mxu0 0.0
    %1535 = vmatpush1.msra.mxu0 0.0
    %1536 = vmatprep.subr.mxu0 0.0
    %1537 = vmatpush1.msra.mxu0 0.0
    %1538 = vmatprep.subr.mxu0 0.0
    %1539 = vmatpush1.msra.mxu0 0.0
    %1540 = vmatprep.subr.mxu0 0.0
    %1541 = vmatpush1.msra.mxu0 0.0
    %1542 = vmatprep.subr.mxu0 0.0
    %1543 = vmatpush1.msra.mxu0 0.0
    %1544 = vmatprep.subr.mxu0 0.0
    %1545 = vmatpush1.msra.mxu0 0.0
    %1546 = vmatprep.subr.mxu0 0.0
    %1547 = vmatpush1.msra.mxu0 0.0
    %1548 = vmatprep.subr.mxu0 0.0
    %1549 = vmatpush1.msra.mxu0 0.0
    %1550 = vmatprep.subr.mxu0 0.0
    %1551 = vmatpush1.msra.mxu0 0.0
    %1552 = vmatprep.subr.mxu0 0.0
    %1553 = vmatpush1.msra.mxu0 0.0
    %1554 = vmatprep.subr.mxu0 0.0
    %1555 = vmatpush1.msra.mxu0 0.0
    %1556 = vmatprep.subr.mxu0 0.0
    %1557 = vmatpush1.msra.mxu0 0.0
    %1558 = vmatprep.subr.mxu0 0.0
    %1559 = vmatpush1.msra.mxu0 0.0
    %1560 = vmatprep.subr.mxu0 0.0
    %1561 = vmatpush1.msra.mxu0 0.0
    %1562 = vmatprep.subr.mxu0 0.0
    %1563 = vmatpush1.msra.mxu0 0.0
    %1564 = vmatprep.subr.mxu0 0.0
    %1565 = vmatpush1.msra.mxu0 0.0
    %1566 = vmatprep.subr.mxu0 0.0
    %1567 = vmatpush1.msra.mxu0 0.0
    %1568 = vmatprep.subr.mxu0 0.0
    %1569 = vmatpush1.msra.mxu0 0.0
    %1570 = vmatprep.subr.mxu0 0.0
    %1571 = vmatpush1.msra.mxu0 0.0
    %1572 = vmatprep.subr.mxu0 0.0
    %1573 = vmatpush1.msra.mxu0 0.0
    %1574 = vmatprep.mubr.f32.mxu0 0.0
    %1575 = vmatmul.mubr.f32.gmra.mrb[0].mxu0 %v1368
    %v1576 = vpop.f32.mrb[0].mxu0
    %v1577 = vadd.f32 0.0, %v1576
    %v1578 = vpop.f32.mrb[0].mxu0
    %1579 = vdwg.mxu0
    %1580 = vmatprep.subr.mxu0 0.0
    %1581 = vmatpush1.msra.mxu0 %v35
    %1582 = vmatprep.subr.mxu0 0.0
    %1583 = vmatpush1.msra.mxu0 %v36
    %1584 = vmatprep.subr.mxu0 0.0
    %1585 = vmatpush1.msra.mxu0 %v37
    %1586 = vmatprep.subr.mxu0 0.0
    %1587 = vmatpush1.msra.mxu0 %v38
    %1588 = vmatprep.subr.mxu0 0.0
    %1589 = vmatpush1.msra.mxu0 0.0
    %1590 = vmatprep.subr.mxu0 0.0
    %1591 = vmatpush1.msra.mxu0 0.0
    %1592 = vmatprep.subr.mxu0 0.0
    %1593 = vmatpush1.msra.mxu0 0.0
    %1594 = vmatprep.subr.mxu0 0.0
    %1595 = vmatpush1.msra.mxu0 0.0
    %1596 = vmatprep.subr.mxu0 0.0
    %1597 = vmatpush1.msra.mxu0 0.0
    %1598 = vmatprep.subr.mxu0 0.0
    %1599 = vmatpush1.msra.mxu0 0.0
    %1600 = vmatprep.subr.mxu0 0.0
    %1601 = vmatpush1.msra.mxu0 0.0
    %1602 = vmatprep.subr.mxu0 0.0
    %1603 = vmatpush1.msra.mxu0 0.0
    %1604 = vmatprep.subr.mxu0 0.0
    %1605 = vmatpush1.msra.mxu0 0.0
    %1606 = vmatprep.subr.mxu0 0.0
    %1607 = vmatpush1.msra.mxu0 0.0
    %1608 = vmatprep.subr.mxu0 0.0
    %1609 = vmatpush1.msra.mxu0 0.0
    %1610 = vmatprep.subr.mxu0 0.0
    %1611 = vmatpush1.msra.mxu0 0.0
    %1612 = vmatprep.subr.mxu0 0.0
    %1613 = vmatpush1.msra.mxu0 0.0
    %1614 = vmatprep.subr.mxu0 0.0
    %1615 = vmatpush1.msra.mxu0 0.0
    %1616 = vmatprep.subr.mxu0 0.0
    %1617 = vmatpush1.msra.mxu0 0.0
    %1618 = vmatprep.subr.mxu0 0.0
    %1619 = vmatpush1.msra.mxu0 0.0
    %1620 = vmatprep.subr.mxu0 0.0
    %1621 = vmatpush1.msra.mxu0 0.0
    %1622 = vmatprep.subr.mxu0 0.0
    %1623 = vmatpush1.msra.mxu0 0.0
    %1624 = vmatprep.subr.mxu0 0.0
    %1625 = vmatpush1.msra.mxu0 0.0
    %1626 = vmatprep.subr.mxu0 0.0
    %1627 = vmatpush1.msra.mxu0 0.0
    %1628 = vmatprep.subr.mxu0 0.0
    %1629 = vmatpush1.msra.mxu0 0.0
    %1630 = vmatprep.subr.mxu0 0.0
    %1631 = vmatpush1.msra.mxu0 0.0
    %1632 = vmatprep.subr.mxu0 0.0
    %1633 = vmatpush1.msra.mxu0 0.0
    %1634 = vmatprep.subr.mxu0 0.0
    %1635 = vmatpush1.msra.mxu0 0.0
    %1636 = vmatprep.subr.mxu0 0.0
    %1637 = vmatpush1.msra.mxu0 0.0
    %1638 = vmatprep.subr.mxu0 0.0
    %1639 = vmatpush1.msra.mxu0 0.0
    %1640 = vmatprep.subr.mxu0 0.0
    %1641 = vmatpush1.msra.mxu0 0.0
    %1642 = vmatprep.subr.mxu0 0.0
    %1643 = vmatpush1.msra.mxu0 0.0
    %1644 = vmatprep.mubr.f32.mxu0 0.0
    %1645 = vmatmul.mubr.f32.gmra.mrb[0].mxu0 %v1368
    %v1646 = vpop.f32.mrb[0].mxu0
    %v1647 = vadd.f32 0.0, %v1646
    %v1648 = vpop.f32.mrb[0].mxu0
    %1649 = vdwg.mxu0
    %1651 = vrot.lane.b32.xlu0 %v1437, 120
    %v1652 = vpop.permute.xlu0 %1651
    %v1653 = vsel %vm360, %v1437, 0
    %v1655 = vsel %vm360, %v1652, 0
    %1657 = vmatprep.subr.mxu0 0.0
    %1658 = vmatpush1.xpose.msra.mxu0 %v1655
    %1659 = vmatprep.subr.mxu0 0.0
    %1660 = vmatpush1.xpose.msra.mxu0 0.0
    %1661 = vmatprep.subr.mxu0 0.0
    %1662 = vmatpush1.xpose.msra.mxu0 0.0
    %1663 = vmatprep.subr.mxu0 0.0
    %1664 = vmatpush1.xpose.msra.mxu0 0.0
    %1665 = vmatprep.subr.mxu0 0.0
    %1666 = vmatpush1.xpose.msra.mxu0 0.0
    %1667 = vmatprep.subr.mxu0 0.0
    %1668 = vmatpush1.xpose.msra.mxu0 0.0
    %1669 = vmatprep.subr.mxu0 0.0
    %1670 = vmatpush1.xpose.msra.mxu0 0.0
    %1671 = vmatprep.subr.mxu0 0.0
    %1672 = vmatpush1.xpose.msra.mxu0 0.0
    %1673 = vmatprep.subr.mxu0 0.0
    %1674 = vmatpush1.xpose.msra.mxu0 0.0
    %1675 = vmatprep.subr.mxu0 0.0
    %1676 = vmatpush1.xpose.msra.mxu0 0.0
    %1677 = vmatprep.subr.mxu0 0.0
    %1678 = vmatpush1.xpose.msra.mxu0 0.0
    %1679 = vmatprep.subr.mxu0 0.0
    %1680 = vmatpush1.xpose.msra.mxu0 0.0
    %1681 = vmatprep.subr.mxu0 0.0
    %1682 = vmatpush1.xpose.msra.mxu0 0.0
    %1683 = vmatprep.subr.mxu0 0.0
    %1684 = vmatpush1.xpose.msra.mxu0 0.0
    %1685 = vmatprep.subr.mxu0 0.0
    %1686 = vmatpush1.xpose.msra.mxu0 0.0
    %1687 = vmatprep.subr.mxu0 0.0
    %1688 = vmatpush1.xpose.msra.mxu0 0.0
    %1689 = vmatprep.subr.mxu0 0.0
    %1690 = vmatpush1.xpose.msra.mxu0 0.0
    %1691 = vmatprep.subr.mxu0 0.0
    %1692 = vmatpush1.xpose.msra.mxu0 0.0
    %1693 = vmatprep.subr.mxu0 0.0
    %1694 = vmatpush1.xpose.msra.mxu0 0.0
    %1695 = vmatprep.subr.mxu0 0.0
    %1696 = vmatpush1.xpose.msra.mxu0 0.0
    %1697 = vmatprep.subr.mxu0 0.0
    %1698 = vmatpush1.xpose.msra.mxu0 0.0
    %1699 = vmatprep.subr.mxu0 0.0
    %1700 = vmatpush1.xpose.msra.mxu0 0.0
    %1701 = vmatprep.subr.mxu0 0.0
    %1702 = vmatpush1.xpose.msra.mxu0 0.0
    %1703 = vmatprep.subr.mxu0 0.0
    %1704 = vmatpush1.xpose.msra.mxu0 0.0
    %1705 = vmatprep.subr.mxu0 0.0
    %1706 = vmatpush1.xpose.msra.mxu0 0.0
    %1707 = vmatprep.subr.mxu0 0.0
    %1708 = vmatpush1.xpose.msra.mxu0 0.0
    %1709 = vmatprep.subr.mxu0 0.0
    %1710 = vmatpush1.xpose.msra.mxu0 0.0
    %1711 = vmatprep.subr.mxu0 0.0
    %1712 = vmatpush1.xpose.msra.mxu0 0.0
    %1713 = vmatprep.subr.mxu0 0.0
    %1714 = vmatpush1.xpose.msra.mxu0 0.0
    %1715 = vmatprep.subr.mxu0 0.0
    %1716 = vmatpush1.xpose.msra.mxu0 0.0
    %1717 = vmatprep.subr.mxu0 0.0
    %1718 = vmatpush1.xpose.msra.mxu0 0.0
    %1719 = vmatprep.subr.mxu0 0.0
    %1720 = vmatpush1.xpose.msra.mxu0 0.0
    %1721 = vmatprep.mubr.f32.mxu0 0.0
    %1722 = vmatmul.mubr.f32.gmra.mrb[0].mxu0 %v1653
    %v1723 = vpop.f32.mrb[0].mxu0
    %v1724 = vadd.f32 0.0, %v1723
    %v1725 = vpop.f32.mrb[0].mxu0
    %1726 = vdwg.mxu0
    %1728 = vrot.lane.b32.xlu0 %v1507, 120
    %v1729 = vpop.permute.xlu0 %1728
    %v1730 = vsel %vm360, %v1507, 0
    %v1732 = vsel %vm360, %v1729, 0
    %1734 = vmatprep.subr.mxu0 0.0
    %1735 = vmatpush1.xpose.msra.mxu0 %v1732
    %1736 = vmatprep.subr.mxu0 0.0
    %1737 = vmatpush1.xpose.msra.mxu0 0.0
    %1738 = vmatprep.subr.mxu0 0.0
    %1739 = vmatpush1.xpose.msra.mxu0 0.0
    %1740 = vmatprep.subr.mxu0 0.0
    %1741 = vmatpush1.xpose.msra.mxu0 0.0
    %1742 = vmatprep.subr.mxu0 0.0
    %1743 = vmatpush1.xpose.msra.mxu0 0.0
    %1744 = vmatprep.subr.mxu0 0.0
    %1745 = vmatpush1.xpose.msra.mxu0 0.0
    %1746 = vmatprep.subr.mxu0 0.0
    %1747 = vmatpush1.xpose.msra.mxu0 0.0
    %1748 = vmatprep.subr.mxu0 0.0
    %1749 = vmatpush1.xpose.msra.mxu0 0.0
    %1750 = vmatprep.subr.mxu0 0.0
    %1751 = vmatpush1.xpose.msra.mxu0 0.0
    %1752 = vmatprep.subr.mxu0 0.0
    %1753 = vmatpush1.xpose.msra.mxu0 0.0
    %1754 = vmatprep.subr.mxu0 0.0
    %1755 = vmatpush1.xpose.msra.mxu0 0.0
    %1756 = vmatprep.subr.mxu0 0.0
    %1757 = vmatpush1.xpose.msra.mxu0 0.0
    %1758 = vmatprep.subr.mxu0 0.0
    %1759 = vmatpush1.xpose.msra.mxu0 0.0
    %1760 = vmatprep.subr.mxu0 0.0
    %1761 = vmatpush1.xpose.msra.mxu0 0.0
    %1762 = vmatprep.subr.mxu0 0.0
    %1763 = vmatpush1.xpose.msra.mxu0 0.0
    %1764 = vmatprep.subr.mxu0 0.0
    %1765 = vmatpush1.xpose.msra.mxu0 0.0
    %1766 = vmatprep.subr.mxu0 0.0
    %1767 = vmatpush1.xpose.msra.mxu0 0.0
    %1768 = vmatprep.subr.mxu0 0.0
    %1769 = vmatpush1.xpose.msra.mxu0 0.0
    %1770 = vmatprep.subr.mxu0 0.0
    %1771 = vmatpush1.xpose.msra.mxu0 0.0
    %1772 = vmatprep.subr.mxu0 0.0
    %1773 = vmatpush1.xpose.msra.mxu0 0.0
    %1774 = vmatprep.subr.mxu0 0.0
    %1775 = vmatpush1.xpose.msra.mxu0 0.0
    %1776 = vmatprep.subr.mxu0 0.0
    %1777 = vmatpush1.xpose.msra.mxu0 0.0
    %1778 = vmatprep.subr.mxu0 0.0
    %1779 = vmatpush1.xpose.msra.mxu0 0.0
    %1780 = vmatprep.subr.mxu0 0.0
    %1781 = vmatpush1.xpose.msra.mxu0 0.0
    %1782 = vmatprep.subr.mxu0 0.0
    %1783 = vmatpush1.xpose.msra.mxu0 0.0
    %1784 = vmatprep.subr.mxu0 0.0
    %1785 = vmatpush1.xpose.msra.mxu0 0.0
    %1786 = vmatprep.subr.mxu0 0.0
    %1787 = vmatpush1.xpose.msra.mxu0 0.0
    %1788 = vmatprep.subr.mxu0 0.0
    %1789 = vmatpush1.xpose.msra.mxu0 0.0
    %1790 = vmatprep.subr.mxu0 0.0
    %1791 = vmatpush1.xpose.msra.mxu0 0.0
    %1792 = vmatprep.subr.mxu0 0.0
    %1793 = vmatpush1.xpose.msra.mxu0 0.0
    %1794 = vmatprep.subr.mxu0 0.0
    %1795 = vmatpush1.xpose.msra.mxu0 0.0
    %1796 = vmatprep.subr.mxu0 0.0
    %1797 = vmatpush1.xpose.msra.mxu0 0.0
    %1798 = vmatprep.mubr.f32.mxu0 0.0
    %1799 = vmatmul.mubr.f32.gmra.mrb[0].mxu0 %v1730
    %v1800 = vpop.f32.mrb[0].mxu0
    %v1801 = vadd.f32 0.0, %v1800
    %v1802 = vpop.f32.mrb[0].mxu0
    %1803 = vdwg.mxu0
    %1805 = vrot.lane.b32.xlu0 %v1577, 120
    %v1806 = vpop.permute.xlu0 %1805
    %v1807 = vsel %vm360, %v1577, 0
    %v1809 = vsel %vm360, %v1806, 0
    %1811 = vmatprep.subr.mxu0 0.0
    %1812 = vmatpush1.xpose.msra.mxu0 %v1809
    %1813 = vmatprep.subr.mxu0 0.0
    %1814 = vmatpush1.xpose.msra.mxu0 0.0
    %1815 = vmatprep.subr.mxu0 0.0
    %1816 = vmatpush1.xpose.msra.mxu0 0.0
    %1817 = vmatprep.subr.mxu0 0.0
    %1818 = vmatpush1.xpose.msra.mxu0 0.0
    %1819 = vmatprep.subr.mxu0 0.0
    %1820 = vmatpush1.xpose.msra.mxu0 0.0
    %1821 = vmatprep.subr.mxu0 0.0
    %1822 = vmatpush1.xpose.msra.mxu0 0.0
    %1823 = vmatprep.subr.mxu0 0.0
    %1824 = vmatpush1.xpose.msra.mxu0 0.0
    %1825 = vmatprep.subr.mxu0 0.0
    %1826 = vmatpush1.xpose.msra.mxu0 0.0
    %1827 = vmatprep.subr.mxu0 0.0
    %1828 = vmatpush1.xpose.msra.mxu0 0.0
    %1829 = vmatprep.subr.mxu0 0.0
    %1830 = vmatpush1.xpose.msra.mxu0 0.0
    %1831 = vmatprep.subr.mxu0 0.0
    %1832 = vmatpush1.xpose.msra.mxu0 0.0
    %1833 = vmatprep.subr.mxu0 0.0
    %1834 = vmatpush1.xpose.msra.mxu0 0.0
    %1835 = vmatprep.subr.mxu0 0.0
    %1836 = vmatpush1.xpose.msra.mxu0 0.0
    %1837 = vmatprep.subr.mxu0 0.0
    %1838 = vmatpush1.xpose.msra.mxu0 0.0
    %1839 = vmatprep.subr.mxu0 0.0
    %1840 = vmatpush1.xpose.msra.mxu0 0.0
    %1841 = vmatprep.subr.mxu0 0.0
    %1842 = vmatpush1.xpose.msra.mxu0 0.0
    %1843 = vmatprep.subr.mxu0 0.0
    %1844 = vmatpush1.xpose.msra.mxu0 0.0
    %1845 = vmatprep.subr.mxu0 0.0
    %1846 = vmatpush1.xpose.msra.mxu0 0.0
    %1847 = vmatprep.subr.mxu0 0.0
    %1848 = vmatpush1.xpose.msra.mxu0 0.0
    %1849 = vmatprep.subr.mxu0 0.0
    %1850 = vmatpush1.xpose.msra.mxu0 0.0
    %1851 = vmatprep.subr.mxu0 0.0
    %1852 = vmatpush1.xpose.msra.mxu0 0.0
    %1853 = vmatprep.subr.mxu0 0.0
    %1854 = vmatpush1.xpose.msra.mxu0 0.0
    %1855 = vmatprep.subr.mxu0 0.0
    %1856 = vmatpush1.xpose.msra.mxu0 0.0
    %1857 = vmatprep.subr.mxu0 0.0
    %1858 = vmatpush1.xpose.msra.mxu0 0.0
    %1859 = vmatprep.subr.mxu0 0.0
    %1860 = vmatpush1.xpose.msra.mxu0 0.0
    %1861 = vmatprep.subr.mxu0 0.0
    %1862 = vmatpush1.xpose.msra.mxu0 0.0
    %1863 = vmatprep.subr.mxu0 0.0
    %1864 = vmatpush1.xpose.msra.mxu0 0.0
    %1865 = vmatprep.subr.mxu0 0.0
    %1866 = vmatpush1.xpose.msra.mxu0 0.0
    %1867 = vmatprep.subr.mxu0 0.0
    %1868 = vmatpush1.xpose.msra.mxu0 0.0
    %1869 = vmatprep.subr.mxu0 0.0
    %1870 = vmatpush1.xpose.msra.mxu0 0.0
    %1871 = vmatprep.subr.mxu0 0.0
    %1872 = vmatpush1.xpose.msra.mxu0 0.0
    %1873 = vmatprep.subr.mxu0 0.0
    %1874 = vmatpush1.xpose.msra.mxu0 0.0
    %1875 = vmatprep.mubr.f32.mxu0 0.0
    %1876 = vmatmul.mubr.f32.gmra.mrb[0].mxu0 %v1807
    %v1877 = vpop.f32.mrb[0].mxu0
    %v1878 = vadd.f32 0.0, %v1877
    %v1879 = vpop.f32.mrb[0].mxu0
    %1880 = vdwg.mxu0
    %1882 = vrot.lane.b32.xlu0 %v1647, 120
    %v1883 = vpop.permute.xlu0 %1882
    %v1884 = vsel %vm360, %v1647, 0
    %v1886 = vsel %vm360, %v1883, 0
    %1888 = vmatprep.subr.mxu0 0.0
    %1889 = vmatpush1.xpose.msra.mxu0 %v1886
    %1890 = vmatprep.subr.mxu0 0.0
    %1891 = vmatpush1.xpose.msra.mxu0 0.0
    %1892 = vmatprep.subr.mxu0 0.0
    %1893 = vmatpush1.xpose.msra.mxu0 0.0
    %1894 = vmatprep.subr.mxu0 0.0
    %1895 = vmatpush1.xpose.msra.mxu0 0.0
    %1896 = vmatprep.subr.mxu0 0.0
    %1897 = vmatpush1.xpose.msra.mxu0 0.0
    %1898 = vmatprep.subr.mxu0 0.0
    %1899 = vmatpush1.xpose.msra.mxu0 0.0
    %1900 = vmatprep.subr.mxu0 0.0
    %1901 = vmatpush1.xpose.msra.mxu0 0.0
    %1902 = vmatprep.subr.mxu0 0.0
    %1903 = vmatpush1.xpose.msra.mxu0 0.0
    %1904 = vmatprep.subr.mxu0 0.0
    %1905 = vmatpush1.xpose.msra.mxu0 0.0
    %1906 = vmatprep.subr.mxu0 0.0
    %1907 = vmatpush1.xpose.msra.mxu0 0.0
    %1908 = vmatprep.subr.mxu0 0.0
    %1909 = vmatpush1.xpose.msra.mxu0 0.0
    %1910 = vmatprep.subr.mxu0 0.0
    %1911 = vmatpush1.xpose.msra.mxu0 0.0
    %1912 = vmatprep.subr.mxu0 0.0
    %1913 = vmatpush1.xpose.msra.mxu0 0.0
    %1914 = vmatprep.subr.mxu0 0.0
    %1915 = vmatpush1.xpose.msra.mxu0 0.0
    %1916 = vmatprep.subr.mxu0 0.0
    %1917 = vmatpush1.xpose.msra.mxu0 0.0
    %1918 = vmatprep.subr.mxu0 0.0
    %1919 = vmatpush1.xpose.msra.mxu0 0.0
    %1920 = vmatprep.subr.mxu0 0.0
    %1921 = vmatpush1.xpose.msra.mxu0 0.0
    %1922 = vmatprep.subr.mxu0 0.0
    %1923 = vmatpush1.xpose.msra.mxu0 0.0
    %1924 = vmatprep.subr.mxu0 0.0
    %1925 = vmatpush1.xpose.msra.mxu0 0.0
    %1926 = vmatprep.subr.mxu0 0.0
    %1927 = vmatpush1.xpose.msra.mxu0 0.0
    %1928 = vmatprep.subr.mxu0 0.0
    %1929 = vmatpush1.xpose.msra.mxu0 0.0
    %1930 = vmatprep.subr.mxu0 0.0
    %1931 = vmatpush1.xpose.msra.mxu0 0.0
    %1932 = vmatprep.subr.mxu0 0.0
    %1933 = vmatpush1.xpose.msra.mxu0 0.0
    %1934 = vmatprep.subr.mxu0 0.0
    %1935 = vmatpush1.xpose.msra.mxu0 0.0
    %1936 = vmatprep.subr.mxu0 0.0
    %1937 = vmatpush1.xpose.msra.mxu0 0.0
    %1938 = vmatprep.subr.mxu0 0.0
    %1939 = vmatpush1.xpose.msra.mxu0 0.0
    %1940 = vmatprep.subr.mxu0 0.0
    %1941 = vmatpush1.xpose.msra.mxu0 0.0
    %1942 = vmatprep.subr.mxu0 0.0
    %1943 = vmatpush1.xpose.msra.mxu0 0.0
    %1944 = vmatprep.subr.mxu0 0.0
    %1945 = vmatpush1.xpose.msra.mxu0 0.0
    %1946 = vmatprep.subr.mxu0 0.0
    %1947 = vmatpush1.xpose.msra.mxu0 0.0
    %1948 = vmatprep.subr.mxu0 0.0
    %1949 = vmatpush1.xpose.msra.mxu0 0.0
    %1950 = vmatprep.subr.mxu0 0.0
    %1951 = vmatpush1.xpose.msra.mxu0 0.0
    %1952 = vmatprep.mubr.f32.mxu0 0.0
    %1953 = vmatmul.mubr.f32.gmra.mrb[0].mxu0 %v1884
    %v1954 = vpop.f32.mrb[0].mxu0
    %v1955 = vadd.f32 0.0, %v1954
    %v1956 = vpop.f32.mrb[0].mxu0
    %1957 = vdwg.mxu0
    %v1958 = vsel %vm667, -inf, %v1724
    %v1959 = vsel %vm667, -inf, %v1801
    %v1960 = vsel %vm667, -inf, %v1878
    %v1961 = vsel %vm667, -inf, %v1955
    %v1962 = vsel %vm360, %v1958, -inf
    %1963 = vmax.xlane.f32.xlu0 %v1962
    %v1964 = vpop.xlane.xlu0 %1963
    %v1965 = vsel %vm360, %v1959, -inf
    %1966 = vmax.xlane.f32.xlu0 %v1965
    %v1967 = vpop.xlane.xlu0 %1966
    %v1968 = vsel %vm360, %v1960, -inf
    %1969 = vmax.xlane.f32.xlu0 %v1968
    %v1970 = vpop.xlane.xlu0 %1969
    %v1971 = vsel %vm360, %v1961, -inf
    %1972 = vmax.xlane.f32.xlu0 %v1971
    %v1973 = vpop.xlane.xlu0 %1972
    %v1974 = vsub.f32 %v1958, %v1964
    %v1975 = vsub.f32 %v1959, %v1967
    %v1976 = vsub.f32 %v1960, %v1970
    %v1977 = vsub.f32 %v1961, %v1973
    %v1978 = vmul.f32 %v1974, 1.442695
    %v1979 = vpow.pop %v1978
    %v1980 = vmul.f32 %v1975, 1.442695
    %v1981 = vpow.pop %v1980
    %v1982 = vmul.f32 %v1976, 1.442695
    %v1983 = vpow.pop %v1982
    %v1984 = vmul.f32 %v1977, 1.442695
    %v1985 = vpow.pop %v1984
    %v1986 = vsel %vm360, %v1979, 0.0
    %1987 = vadd.xlane.f32.xlu0 %v1986
    %v1988 = vpop.xlane.xlu0 %1987
    %v1989 = vsel %vm360, %v1981, 0.0
    %1990 = vadd.xlane.f32.xlu0 %v1989
    %v1991 = vpop.xlane.xlu0 %1990
    %v1992 = vsel %vm360, %v1983, 0.0
    %1993 = vadd.xlane.f32.xlu0 %v1992
    %v1994 = vpop.xlane.xlu0 %1993
    %v1995 = vsel %vm360, %v1985, 0.0
    %1996 = vadd.xlane.f32.xlu0 %v1995
    %v1997 = vpop.xlane.xlu0 %1996
    %v1998 = vrcp.pop %v1988
    %v1999 = vrcp.pop %v1991
    %v2000 = vrcp.pop %v1994
    %v2001 = vrcp.pop %v1997
    %v2002 = vmul.f32 %v1979, %v1998
    %v2003 = vmul.f32 %v1981, %v1999
    %v2004 = vmul.f32 %v1983, %v2000
    %v2005 = vmul.f32 %v1985, %v2001
    %2006 = vrot.lane.b32.xlu0 %v1437, 112
    %v2007 = vpop.permute.xlu0 %2006
    %v2010 = vsel %vm360, %v2002, 0
    %2012 = vmatprep.subr.mxu0 0.0
    %2013 = vmatpush1.msra.mxu0 %v2007
    %2014 = vmatprep.subr.mxu0 0.0
    %2015 = vmatpush1.msra.mxu0 0.0
    %2016 = vmatprep.subr.mxu0 0.0
    %2017 = vmatpush1.msra.mxu0 0.0
    %2018 = vmatprep.subr.mxu0 0.0
    %2019 = vmatpush1.msra.mxu0 0.0
    %2020 = vmatprep.subr.mxu0 0.0
    %2021 = vmatpush1.msra.mxu0 0.0
    %2022 = vmatprep.subr.mxu0 0.0
    %2023 = vmatpush1.msra.mxu0 0.0
    %2024 = vmatprep.subr.mxu0 0.0
    %2025 = vmatpush1.msra.mxu0 0.0
    %2026 = vmatprep.subr.mxu0 0.0
    %2027 = vmatpush1.msra.mxu0 0.0
    %2028 = vmatprep.subr.mxu0 0.0
    %2029 = vmatpush1.msra.mxu0 0.0
    %2030 = vmatprep.subr.mxu0 0.0
    %2031 = vmatpush1.msra.mxu0 0.0
    %2032 = vmatprep.subr.mxu0 0.0
    %2033 = vmatpush1.msra.mxu0 0.0
    %2034 = vmatprep.subr.mxu0 0.0
    %2035 = vmatpush1.msra.mxu0 0.0
    %2036 = vmatprep.subr.mxu0 0.0
    %2037 = vmatpush1.msra.mxu0 0.0
    %2038 = vmatprep.subr.mxu0 0.0
    %2039 = vmatpush1.msra.mxu0 0.0
    %2040 = vmatprep.subr.mxu0 0.0
    %2041 = vmatpush1.msra.mxu0 0.0
    %2042 = vmatprep.subr.mxu0 0.0
    %2043 = vmatpush1.msra.mxu0 0.0
    %2044 = vmatprep.subr.mxu0 0.0
    %2045 = vmatpush1.msra.mxu0 0.0
    %2046 = vmatprep.subr.mxu0 0.0
    %2047 = vmatpush1.msra.mxu0 0.0
    %2048 = vmatprep.subr.mxu0 0.0
    %2049 = vmatpush1.msra.mxu0 0.0
    %2050 = vmatprep.subr.mxu0 0.0
    %2051 = vmatpush1.msra.mxu0 0.0
    %2052 = vmatprep.subr.mxu0 0.0
    %2053 = vmatpush1.msra.mxu0 0.0
    %2054 = vmatprep.subr.mxu0 0.0
    %2055 = vmatpush1.msra.mxu0 0.0
    %2056 = vmatprep.subr.mxu0 0.0
    %2057 = vmatpush1.msra.mxu0 0.0
    %2058 = vmatprep.subr.mxu0 0.0
    %2059 = vmatpush1.msra.mxu0 0.0
    %2060 = vmatprep.subr.mxu0 0.0
    %2061 = vmatpush1.msra.mxu0 0.0
    %2062 = vmatprep.subr.mxu0 0.0
    %2063 = vmatpush1.msra.mxu0 0.0
    %2064 = vmatprep.subr.mxu0 0.0
    %2065 = vmatpush1.msra.mxu0 0.0
    %2066 = vmatprep.subr.mxu0 0.0
    %2067 = vmatpush1.msra.mxu0 0.0
    %2068 = vmatprep.subr.mxu0 0.0
    %2069 = vmatpush1.msra.mxu0 0.0
    %2070 = vmatprep.subr.mxu0 0.0
    %2071 = vmatpush1.msra.mxu0 0.0
    %2072 = vmatprep.subr.mxu0 0.0
    %2073 = vmatpush1.msra.mxu0 0.0
    %2074 = vmatprep.subr.mxu0 0.0
    %2075 = vmatpush1.msra.mxu0 0.0
    %2076 = vmatprep.mubr.f32.mxu0 0.0
    %2077 = vmatmul.mubr.f32.gmra.mrb[0].mxu0 %v2010
    %v2078 = vpop.f32.mrb[0].mxu0
    %v2079 = vadd.f32 0.0, %v2078
    %v2080 = vpop.f32.mrb[0].mxu0
    %2081 = vdwg.mxu0
    %2082 = vrot.lane.b32.xlu0 %v1507, 112
    %v2083 = vpop.permute.xlu0 %2082
    %v2086 = vsel %vm360, %v2003, 0
    %2088 = vmatprep.subr.mxu0 0.0
    %2089 = vmatpush1.msra.mxu0 %v2083
    %2090 = vmatprep.subr.mxu0 0.0
    %2091 = vmatpush1.msra.mxu0 0.0
    %2092 = vmatprep.subr.mxu0 0.0
    %2093 = vmatpush1.msra.mxu0 0.0
    %2094 = vmatprep.subr.mxu0 0.0
    %2095 = vmatpush1.msra.mxu0 0.0
    %2096 = vmatprep.subr.mxu0 0.0
    %2097 = vmatpush1.msra.mxu0 0.0
    %2098 = vmatprep.subr.mxu0 0.0
    %2099 = vmatpush1.msra.mxu0 0.0
    %2100 = vmatprep.subr.mxu0 0.0
    %2101 = vmatpush1.msra.mxu0 0.0
    %2102 = vmatprep.subr.mxu0 0.0
    %2103 = vmatpush1.msra.mxu0 0.0
    %2104 = vmatprep.subr.mxu0 0.0
    %2105 = vmatpush1.msra.mxu0 0.0
    %2106 = vmatprep.subr.mxu0 0.0
    %2107 = vmatpush1.msra.mxu0 0.0
    %2108 = vmatprep.subr.mxu0 0.0
    %2109 = vmatpush1.msra.mxu0 0.0
    %2110 = vmatprep.subr.mxu0 0.0
    %2111 = vmatpush1.msra.mxu0 0.0
    %2112 = vmatprep.subr.mxu0 0.0
    %2113 = vmatpush1.msra.mxu0 0.0
    %2114 = vmatprep.subr.mxu0 0.0
    %2115 = vmatpush1.msra.mxu0 0.0
    %2116 = vmatprep.subr.mxu0 0.0
    %2117 = vmatpush1.msra.mxu0 0.0
    %2118 = vmatprep.subr.mxu0 0.0
    %2119 = vmatpush1.msra.mxu0 0.0
    %2120 = vmatprep.subr.mxu0 0.0
    %2121 = vmatpush1.msra.mxu0 0.0
    %2122 = vmatprep.subr.mxu0 0.0
    %2123 = vmatpush1.msra.mxu0 0.0
    %2124 = vmatprep.subr.mxu0 0.0
    %2125 = vmatpush1.msra.mxu0 0.0
    %2126 = vmatprep.subr.mxu0 0.0
    %2127 = vmatpush1.msra.mxu0 0.0
    %2128 = vmatprep.subr.mxu0 0.0
    %2129 = vmatpush1.msra.mxu0 0.0
    %2130 = vmatprep.subr.mxu0 0.0
    %2131 = vmatpush1.msra.mxu0 0.0
    %2132 = vmatprep.subr.mxu0 0.0
    %2133 = vmatpush1.msra.mxu0 0.0
    %2134 = vmatprep.subr.mxu0 0.0
    %2135 = vmatpush1.msra.mxu0 0.0
    %2136 = vmatprep.subr.mxu0 0.0
    %2137 = vmatpush1.msra.mxu0 0.0
    %2138 = vmatprep.subr.mxu0 0.0
    %2139 = vmatpush1.msra.mxu0 0.0
    %2140 = vmatprep.subr.mxu0 0.0
    %2141 = vmatpush1.msra.mxu0 0.0
    %2142 = vmatprep.subr.mxu0 0.0
    %2143 = vmatpush1.msra.mxu0 0.0
    %2144 = vmatprep.subr.mxu0 0.0
    %2145 = vmatpush1.msra.mxu0 0.0
    %2146 = vmatprep.subr.mxu0 0.0
    %2147 = vmatpush1.msra.mxu0 0.0
    %2148 = vmatprep.subr.mxu0 0.0
    %2149 = vmatpush1.msra.mxu0 0.0
    %2150 = vmatprep.subr.mxu0 0.0
    %2151 = vmatpush1.msra.mxu0 0.0
    %2152 = vmatprep.mubr.f32.mxu0 0.0
    %2153 = vmatmul.mubr.f32.gmra.mrb[0].mxu0 %v2086
    %v2154 = vpop.f32.mrb[0].mxu0
    %v2155 = vadd.f32 0.0, %v2154
    %v2156 = vpop.f32.mrb[0].mxu0
    %2157 = vdwg.mxu0
    %2158 = vrot.lane.b32.xlu0 %v1577, 112
    %v2159 = vpop.permute.xlu0 %2158
    %v2162 = vsel %vm360, %v2004, 0
    %2164 = vmatprep.subr.mxu0 0.0
    %2165 = vmatpush1.msra.mxu0 %v2159
    %2166 = vmatprep.subr.mxu0 0.0
    %2167 = vmatpush1.msra.mxu0 0.0
    %2168 = vmatprep.subr.mxu0 0.0
    %2169 = vmatpush1.msra.mxu0 0.0
    %2170 = vmatprep.subr.mxu0 0.0
    %2171 = vmatpush1.msra.mxu0 0.0
    %2172 = vmatprep.subr.mxu0 0.0
    %2173 = vmatpush1.msra.mxu0 0.0
    %2174 = vmatprep.subr.mxu0 0.0
    %2175 = vmatpush1.msra.mxu0 0.0
    %2176 = vmatprep.subr.mxu0 0.0
    %2177 = vmatpush1.msra.mxu0 0.0
    %2178 = vmatprep.subr.mxu0 0.0
    %2179 = vmatpush1.msra.mxu0 0.0
    %2180 = vmatprep.subr.mxu0 0.0
    %2181 = vmatpush1.msra.mxu0 0.0
    %2182 = vmatprep.subr.mxu0 0.0
    %2183 = vmatpush1.msra.mxu0 0.0
    %2184 = vmatprep.subr.mxu0 0.0
    %2185 = vmatpush1.msra.mxu0 0.0
    %2186 = vmatprep.subr.mxu0 0.0
    %2187 = vmatpush1.msra.mxu0 0.0
    %2188 = vmatprep.subr.mxu0 0.0
    %2189 = vmatpush1.msra.mxu0 0.0
    %2190 = vmatprep.subr.mxu0 0.0
    %2191 = vmatpush1.msra.mxu0 0.0
    %2192 = vmatprep.subr.mxu0 0.0
    %2193 = vmatpush1.msra.mxu0 0.0
    %2194 = vmatprep.subr.mxu0 0.0
    %2195 = vmatpush1.msra.mxu0 0.0
    %2196 = vmatprep.subr.mxu0 0.0
    %2197 = vmatpush1.msra.mxu0 0.0
    %2198 = vmatprep.subr.mxu0 0.0
    %2199 = vmatpush1.msra.mxu0 0.0
    %2200 = vmatprep.subr.mxu0 0.0
    %2201 = vmatpush1.msra.mxu0 0.0
    %2202 = vmatprep.subr.mxu0 0.0
    %2203 = vmatpush1.msra.mxu0 0.0
    %2204 = vmatprep.subr.mxu0 0.0
    %2205 = vmatpush1.msra.mxu0 0.0
    %2206 = vmatprep.subr.mxu0 0.0
    %2207 = vmatpush1.msra.mxu0 0.0
    %2208 = vmatprep.subr.mxu0 0.0
    %2209 = vmatpush1.msra.mxu0 0.0
    %2210 = vmatprep.subr.mxu0 0.0
    %2211 = vmatpush1.msra.mxu0 0.0
    %2212 = vmatprep.subr.mxu0 0.0
    %2213 = vmatpush1.msra.mxu0 0.0
    %2214 = vmatprep.subr.mxu0 0.0
    %2215 = vmatpush1.msra.mxu0 0.0
    %2216 = vmatprep.subr.mxu0 0.0
    %2217 = vmatpush1.msra.mxu0 0.0
    %2218 = vmatprep.subr.mxu0 0.0
    %2219 = vmatpush1.msra.mxu0 0.0
    %2220 = vmatprep.subr.mxu0 0.0
    %2221 = vmatpush1.msra.mxu0 0.0
    %2222 = vmatprep.subr.mxu0 0.0
    %2223 = vmatpush1.msra.mxu0 0.0
    %2224 = vmatprep.subr.mxu0 0.0
    %2225 = vmatpush1.msra.mxu0 0.0
    %2226 = vmatprep.subr.mxu0 0.0
    %2227 = vmatpush1.msra.mxu0 0.0
    %2228 = vmatprep.mubr.f32.mxu0 0.0
    %2229 = vmatmul.mubr.f32.gmra.mrb[0].mxu0 %v2162
    %v2230 = vpop.f32.mrb[0].mxu0
    %v2231 = vadd.f32 0.0, %v2230
    %v2232 = vpop.f32.mrb[0].mxu0
    %2233 = vdwg.mxu0
    %2234 = vrot.lane.b32.xlu0 %v1647, 112
    %v2235 = vpop.permute.xlu0 %2234
    %v2238 = vsel %vm360, %v2005, 0
    %2240 = vmatprep.subr.mxu0 0.0
    %2241 = vmatpush1.msra.mxu0 %v2235
    %2242 = vmatprep.subr.mxu0 0.0
    %2243 = vmatpush1.msra.mxu0 0.0
    %2244 = vmatprep.subr.mxu0 0.0
    %2245 = vmatpush1.msra.mxu0 0.0
    %2246 = vmatprep.subr.mxu0 0.0
    %2247 = vmatpush1.msra.mxu0 0.0
    %2248 = vmatprep.subr.mxu0 0.0
    %2249 = vmatpush1.msra.mxu0 0.0
    %2250 = vmatprep.subr.mxu0 0.0
    %2251 = vmatpush1.msra.mxu0 0.0
    %2252 = vmatprep.subr.mxu0 0.0
    %2253 = vmatpush1.msra.mxu0 0.0
    %2254 = vmatprep.subr.mxu0 0.0
    %2255 = vmatpush1.msra.mxu0 0.0
    %2256 = vmatprep.subr.mxu0 0.0
    %2257 = vmatpush1.msra.mxu0 0.0
    %2258 = vmatprep.subr.mxu0 0.0
    %2259 = vmatpush1.msra.mxu0 0.0
    %2260 = vmatprep.subr.mxu0 0.0
    %2261 = vmatpush1.msra.mxu0 0.0
    %2262 = vmatprep.subr.mxu0 0.0
    %2263 = vmatpush1.msra.mxu0 0.0
    %2264 = vmatprep.subr.mxu0 0.0
    %2265 = vmatpush1.msra.mxu0 0.0
    %2266 = vmatprep.subr.mxu0 0.0
    %2267 = vmatpush1.msra.mxu0 0.0
    %2268 = vmatprep.subr.mxu0 0.0
    %2269 = vmatpush1.msra.mxu0 0.0
    %2270 = vmatprep.subr.mxu0 0.0
    %2271 = vmatpush1.msra.mxu0 0.0
    %2272 = vmatprep.subr.mxu0 0.0
    %2273 = vmatpush1.msra.mxu0 0.0
    %2274 = vmatprep.subr.mxu0 0.0
    %2275 = vmatpush1.msra.mxu0 0.0
    %2276 = vmatprep.subr.mxu0 0.0
    %2277 = vmatpush1.msra.mxu0 0.0
    %2278 = vmatprep.subr.mxu0 0.0
    %2279 = vmatpush1.msra.mxu0 0.0
    %2280 = vmatprep.subr.mxu0 0.0
    %2281 = vmatpush1.msra.mxu0 0.0
    %2282 = vmatprep.subr.mxu0 0.0
    %2283 = vmatpush1.msra.mxu0 0.0
    %2284 = vmatprep.subr.mxu0 0.0
    %2285 = vmatpush1.msra.mxu0 0.0
    %2286 = vmatprep.subr.mxu0 0.0
    %2287 = vmatpush1.msra.mxu0 0.0
    %2288 = vmatprep.subr.mxu0 0.0
    %2289 = vmatpush1.msra.mxu0 0.0
    %2290 = vmatprep.subr.mxu0 0.0
    %2291 = vmatpush1.msra.mxu0 0.0
    %2292 = vmatprep.subr.mxu0 0.0
    %2293 = vmatpush1.msra.mxu0 0.0
    %2294 = vmatprep.subr.mxu0 0.0
    %2295 = vmatpush1.msra.mxu0 0.0
    %2296 = vmatprep.subr.mxu0 0.0
    %2297 = vmatpush1.msra.mxu0 0.0
    %2298 = vmatprep.subr.mxu0 0.0
    %2299 = vmatpush1.msra.mxu0 0.0
    %2300 = vmatprep.subr.mxu0 0.0
    %2301 = vmatpush1.msra.mxu0 0.0
    %2302 = vmatprep.subr.mxu0 0.0
    %2303 = vmatpush1.msra.mxu0 0.0
    %2304 = vmatprep.mubr.f32.mxu0 0.0
    %2305 = vmatmul.mubr.f32.gmra.mrb[0].mxu0 %v2238
    %v2306 = vpop.f32.mrb[0].mxu0
    %v2307 = vadd.f32 0.0, %v2306
    %v2308 = vpop.f32.mrb[0].mxu0
    %2309 = vdwg.mxu0
    %v2311 = vsel %vm360, %v2079, 0
    %2313 = vmatprep.subr.mxu0 0.0
    %2314 = vmatpush1.msra.mxu0 %v39
    %2315 = vmatprep.subr.mxu0 0.0
    %2316 = vmatpush1.msra.mxu0 0.0
    %2317 = vmatprep.subr.mxu0 0.0
    %2318 = vmatpush1.msra.mxu0 0.0
    %2319 = vmatprep.subr.mxu0 0.0
    %2320 = vmatpush1.msra.mxu0 0.0
    %2321 = vmatprep.subr.mxu0 0.0
    %2322 = vmatpush1.msra.mxu0 0.0
    %2323 = vmatprep.subr.mxu0 0.0
    %2324 = vmatpush1.msra.mxu0 0.0
    %2325 = vmatprep.subr.mxu0 0.0
    %2326 = vmatpush1.msra.mxu0 0.0
    %2327 = vmatprep.subr.mxu0 0.0
    %2328 = vmatpush1.msra.mxu0 0.0
    %2329 = vmatprep.subr.mxu0 0.0
    %2330 = vmatpush1.msra.mxu0 0.0
    %2331 = vmatprep.subr.mxu0 0.0
    %2332 = vmatpush1.msra.mxu0 0.0
    %2333 = vmatprep.subr.mxu0 0.0
    %2334 = vmatpush1.msra.mxu0 0.0
    %2335 = vmatprep.subr.mxu0 0.0
    %2336 = vmatpush1.msra.mxu0 0.0
    %2337 = vmatprep.subr.mxu0 0.0
    %2338 = vmatpush1.msra.mxu0 0.0
    %2339 = vmatprep.subr.mxu0 0.0
    %2340 = vmatpush1.msra.mxu0 0.0
    %2341 = vmatprep.subr.mxu0 0.0
    %2342 = vmatpush1.msra.mxu0 0.0
    %2343 = vmatprep.subr.mxu0 0.0
    %2344 = vmatpush1.msra.mxu0 0.0
    %2345 = vmatprep.subr.mxu0 0.0
    %2346 = vmatpush1.msra.mxu0 0.0
    %2347 = vmatprep.subr.mxu0 0.0
    %2348 = vmatpush1.msra.mxu0 0.0
    %2349 = vmatprep.subr.mxu0 0.0
    %2350 = vmatpush1.msra.mxu0 0.0
    %2351 = vmatprep.subr.mxu0 0.0
    %2352 = vmatpush1.msra.mxu0 0.0
    %2353 = vmatprep.subr.mxu0 0.0
    %2354 = vmatpush1.msra.mxu0 0.0
    %2355 = vmatprep.subr.mxu0 0.0
    %2356 = vmatpush1.msra.mxu0 0.0
    %2357 = vmatprep.subr.mxu0 0.0
    %2358 = vmatpush1.msra.mxu0 0.0
    %2359 = vmatprep.subr.mxu0 0.0
    %2360 = vmatpush1.msra.mxu0 0.0
    %2361 = vmatprep.subr.mxu0 0.0
    %2362 = vmatpush1.msra.mxu0 0.0
    %2363 = vmatprep.subr.mxu0 0.0
    %2364 = vmatpush1.msra.mxu0 0.0
    %2365 = vmatprep.subr.mxu0 0.0
    %2366 = vmatpush1.msra.mxu0 0.0
    %2367 = vmatprep.subr.mxu0 0.0
    %2368 = vmatpush1.msra.mxu0 0.0
    %2369 = vmatprep.subr.mxu0 0.0
    %2370 = vmatpush1.msra.mxu0 0.0
    %2371 = vmatprep.subr.mxu0 0.0
    %2372 = vmatpush1.msra.mxu0 0.0
    %2373 = vmatprep.subr.mxu0 0.0
    %2374 = vmatpush1.msra.mxu0 0.0
    %2375 = vmatprep.subr.mxu0 0.0
    %2376 = vmatpush1.msra.mxu0 0.0
    %2377 = vmatprep.mubr.f32.mxu0 0.0
    %2378 = vmatmul.mubr.f32.gmra.mrb[0].mxu0 %v2311
    %v2379 = vpop.f32.mrb[0].mxu0
    %v2380 = vadd.f32 0.0, %v2379
    %v2381 = vpop.f32.mrb[0].mxu0
    %2382 = vdwg.mxu0
    %v2384 = vsel %vm360, %v2155, 0
    %2386 = vmatprep.subr.mxu0 0.0
    %2387 = vmatpush1.msra.mxu0 %v40
    %2388 = vmatprep.subr.mxu0 0.0
    %2389 = vmatpush1.msra.mxu0 0.0
    %2390 = vmatprep.subr.mxu0 0.0
    %2391 = vmatpush1.msra.mxu0 0.0
    %2392 = vmatprep.subr.mxu0 0.0
    %2393 = vmatpush1.msra.mxu0 0.0
    %2394 = vmatprep.subr.mxu0 0.0
    %2395 = vmatpush1.msra.mxu0 0.0
    %2396 = vmatprep.subr.mxu0 0.0
    %2397 = vmatpush1.msra.mxu0 0.0
    %2398 = vmatprep.subr.mxu0 0.0
    %2399 = vmatpush1.msra.mxu0 0.0
    %2400 = vmatprep.subr.mxu0 0.0
    %2401 = vmatpush1.msra.mxu0 0.0
    %2402 = vmatprep.subr.mxu0 0.0
    %2403 = vmatpush1.msra.mxu0 0.0
    %2404 = vmatprep.subr.mxu0 0.0
    %2405 = vmatpush1.msra.mxu0 0.0
    %2406 = vmatprep.subr.mxu0 0.0
    %2407 = vmatpush1.msra.mxu0 0.0
    %2408 = vmatprep.subr.mxu0 0.0
    %2409 = vmatpush1.msra.mxu0 0.0
    %2410 = vmatprep.subr.mxu0 0.0
    %2411 = vmatpush1.msra.mxu0 0.0
    %2412 = vmatprep.subr.mxu0 0.0
    %2413 = vmatpush1.msra.mxu0 0.0
    %2414 = vmatprep.subr.mxu0 0.0
    %2415 = vmatpush1.msra.mxu0 0.0
    %2416 = vmatprep.subr.mxu0 0.0
    %2417 = vmatpush1.msra.mxu0 0.0
    %2418 = vmatprep.subr.mxu0 0.0
    %2419 = vmatpush1.msra.mxu0 0.0
    %2420 = vmatprep.subr.mxu0 0.0
    %2421 = vmatpush1.msra.mxu0 0.0
    %2422 = vmatprep.subr.mxu0 0.0
    %2423 = vmatpush1.msra.mxu0 0.0
    %2424 = vmatprep.subr.mxu0 0.0
    %2425 = vmatpush1.msra.mxu0 0.0
    %2426 = vmatprep.subr.mxu0 0.0
    %2427 = vmatpush1.msra.mxu0 0.0
    %2428 = vmatprep.subr.mxu0 0.0
    %2429 = vmatpush1.msra.mxu0 0.0
    %2430 = vmatprep.subr.mxu0 0.0
    %2431 = vmatpush1.msra.mxu0 0.0
    %2432 = vmatprep.subr.mxu0 0.0
    %2433 = vmatpush1.msra.mxu0 0.0
    %2434 = vmatprep.subr.mxu0 0.0
    %2435 = vmatpush1.msra.mxu0 0.0
    %2436 = vmatprep.subr.mxu0 0.0
    %2437 = vmatpush1.msra.mxu0 0.0
    %2438 = vmatprep.subr.mxu0 0.0
    %2439 = vmatpush1.msra.mxu0 0.0
    %2440 = vmatprep.subr.mxu0 0.0
    %2441 = vmatpush1.msra.mxu0 0.0
    %2442 = vmatprep.subr.mxu0 0.0
    %2443 = vmatpush1.msra.mxu0 0.0
    %2444 = vmatprep.subr.mxu0 0.0
    %2445 = vmatpush1.msra.mxu0 0.0
    %2446 = vmatprep.subr.mxu0 0.0
    %2447 = vmatpush1.msra.mxu0 0.0
    %2448 = vmatprep.subr.mxu0 0.0
    %2449 = vmatpush1.msra.mxu0 0.0
    %2450 = vmatprep.mubr.f32.mxu0 0.0
    %2451 = vmatmul.mubr.f32.gmra.mrb[0].mxu0 %v2384
    %v2452 = vpop.f32.mrb[0].mxu0
    %v2453 = vadd.f32 0.0, %v2452
    %v2454 = vpop.f32.mrb[0].mxu0
    %2455 = vdwg.mxu0
    %v2457 = vsel %vm360, %v2231, 0
    %2459 = vmatprep.subr.mxu0 0.0
    %2460 = vmatpush1.msra.mxu0 %v41
    %2461 = vmatprep.subr.mxu0 0.0
    %2462 = vmatpush1.msra.mxu0 0.0
    %2463 = vmatprep.subr.mxu0 0.0
    %2464 = vmatpush1.msra.mxu0 0.0
    %2465 = vmatprep.subr.mxu0 0.0
    %2466 = vmatpush1.msra.mxu0 0.0
    %2467 = vmatprep.subr.mxu0 0.0
    %2468 = vmatpush1.msra.mxu0 0.0
    %2469 = vmatprep.subr.mxu0 0.0
    %2470 = vmatpush1.msra.mxu0 0.0
    %2471 = vmatprep.subr.mxu0 0.0
    %2472 = vmatpush1.msra.mxu0 0.0
    %2473 = vmatprep.subr.mxu0 0.0
    %2474 = vmatpush1.msra.mxu0 0.0
    %2475 = vmatprep.subr.mxu0 0.0
    %2476 = vmatpush1.msra.mxu0 0.0
    %2477 = vmatprep.subr.mxu0 0.0
    %2478 = vmatpush1.msra.mxu0 0.0
    %2479 = vmatprep.subr.mxu0 0.0
    %2480 = vmatpush1.msra.mxu0 0.0
    %2481 = vmatprep.subr.mxu0 0.0
    %2482 = vmatpush1.msra.mxu0 0.0
    %2483 = vmatprep.subr.mxu0 0.0
    %2484 = vmatpush1.msra.mxu0 0.0
    %2485 = vmatprep.subr.mxu0 0.0
    %2486 = vmatpush1.msra.mxu0 0.0
    %2487 = vmatprep.subr.mxu0 0.0
    %2488 = vmatpush1.msra.mxu0 0.0
    %2489 = vmatprep.subr.mxu0 0.0
    %2490 = vmatpush1.msra.mxu0 0.0
    %2491 = vmatprep.subr.mxu0 0.0
    %2492 = vmatpush1.msra.mxu0 0.0
    %2493 = vmatprep.subr.mxu0 0.0
    %2494 = vmatpush1.msra.mxu0 0.0
    %2495 = vmatprep.subr.mxu0 0.0
    %2496 = vmatpush1.msra.mxu0 0.0
    %2497 = vmatprep.subr.mxu0 0.0
    %2498 = vmatpush1.msra.mxu0 0.0
    %2499 = vmatprep.subr.mxu0 0.0
    %2500 = vmatpush1.msra.mxu0 0.0
    %2501 = vmatprep.subr.mxu0 0.0
    %2502 = vmatpush1.msra.mxu0 0.0
    %2503 = vmatprep.subr.mxu0 0.0
    %2504 = vmatpush1.msra.mxu0 0.0
    %2505 = vmatprep.subr.mxu0 0.0
    %2506 = vmatpush1.msra.mxu0 0.0
    %2507 = vmatprep.subr.mxu0 0.0
    %2508 = vmatpush1.msra.mxu0 0.0
    %2509 = vmatprep.subr.mxu0 0.0
    %2510 = vmatpush1.msra.mxu0 0.0
    %2511 = vmatprep.subr.mxu0 0.0
    %2512 = vmatpush1.msra.mxu0 0.0
    %2513 = vmatprep.subr.mxu0 0.0
    %2514 = vmatpush1.msra.mxu0 0.0
    %2515 = vmatprep.subr.mxu0 0.0
    %2516 = vmatpush1.msra.mxu0 0.0
    %2517 = vmatprep.subr.mxu0 0.0
    %2518 = vmatpush1.msra.mxu0 0.0
    %2519 = vmatprep.subr.mxu0 0.0
    %2520 = vmatpush1.msra.mxu0 0.0
    %2521 = vmatprep.subr.mxu0 0.0
    %2522 = vmatpush1.msra.mxu0 0.0
    %2523 = vmatprep.mubr.f32.mxu0 0.0
    %2524 = vmatmul.mubr.f32.gmra.mrb[0].mxu0 %v2457
    %v2525 = vpop.f32.mrb[0].mxu0
    %v2526 = vadd.f32 0.0, %v2525
    %v2527 = vpop.f32.mrb[0].mxu0
    %2528 = vdwg.mxu0
    %v2530 = vsel %vm360, %v2307, 0
    %2532 = vmatprep.subr.mxu0 0.0
    %2533 = vmatpush1.msra.mxu0 %v42
    %2534 = vmatprep.subr.mxu0 0.0
    %2535 = vmatpush1.msra.mxu0 0.0
    %2536 = vmatprep.subr.mxu0 0.0
    %2537 = vmatpush1.msra.mxu0 0.0
    %2538 = vmatprep.subr.mxu0 0.0
    %2539 = vmatpush1.msra.mxu0 0.0
    %2540 = vmatprep.subr.mxu0 0.0
    %2541 = vmatpush1.msra.mxu0 0.0
    %2542 = vmatprep.subr.mxu0 0.0
    %2543 = vmatpush1.msra.mxu0 0.0
    %2544 = vmatprep.subr.mxu0 0.0
    %2545 = vmatpush1.msra.mxu0 0.0
    %2546 = vmatprep.subr.mxu0 0.0
    %2547 = vmatpush1.msra.mxu0 0.0
    %2548 = vmatprep.subr.mxu0 0.0
    %2549 = vmatpush1.msra.mxu0 0.0
    %2550 = vmatprep.subr.mxu0 0.0
    %2551 = vmatpush1.msra.mxu0 0.0
    %2552 = vmatprep.subr.mxu0 0.0
    %2553 = vmatpush1.msra.mxu0 0.0
    %2554 = vmatprep.subr.mxu0 0.0
    %2555 = vmatpush1.msra.mxu0 0.0
    %2556 = vmatprep.subr.mxu0 0.0
    %2557 = vmatpush1.msra.mxu0 0.0
    %2558 = vmatprep.subr.mxu0 0.0
    %2559 = vmatpush1.msra.mxu0 0.0
    %2560 = vmatprep.subr.mxu0 0.0
    %2561 = vmatpush1.msra.mxu0 0.0
    %2562 = vmatprep.subr.mxu0 0.0
    %2563 = vmatpush1.msra.mxu0 0.0
    %2564 = vmatprep.subr.mxu0 0.0
    %2565 = vmatpush1.msra.mxu0 0.0
    %2566 = vmatprep.subr.mxu0 0.0
    %2567 = vmatpush1.msra.mxu0 0.0
    %2568 = vmatprep.subr.mxu0 0.0
    %2569 = vmatpush1.msra.mxu0 0.0
    %2570 = vmatprep.subr.mxu0 0.0
    %2571 = vmatpush1.msra.mxu0 0.0
    %2572 = vmatprep.subr.mxu0 0.0
    %2573 = vmatpush1.msra.mxu0 0.0
    %2574 = vmatprep.subr.mxu0 0.0
    %2575 = vmatpush1.msra.mxu0 0.0
    %2576 = vmatprep.subr.mxu0 0.0
    %2577 = vmatpush1.msra.mxu0 0.0
    %2578 = vmatprep.subr.mxu0 0.0
    %2579 = vmatpush1.msra.mxu0 0.0
    %2580 = vmatprep.subr.mxu0 0.0
    %2581 = vmatpush1.msra.mxu0 0.0
    %2582 = vmatprep.subr.mxu0 0.0
    %2583 = vmatpush1.msra.mxu0 0.0
    %2584 = vmatprep.subr.mxu0 0.0
    %2585 = vmatpush1.msra.mxu0 0.0
    %2586 = vmatprep.subr.mxu0 0.0
    %2587 = vmatpush1.msra.mxu0 0.0
    %2588 = vmatprep.subr.mxu0 0.0
    %2589 = vmatpush1.msra.mxu0 0.0
    %2590 = vmatprep.subr.mxu0 0.0
    %2591 = vmatpush1.msra.mxu0 0.0
    %2592 = vmatprep.subr.mxu0 0.0
    %2593 = vmatpush1.msra.mxu0 0.0
    %2594 = vmatprep.subr.mxu0 0.0
    %2595 = vmatpush1.msra.mxu0 0.0
    %2596 = vmatprep.mubr.f32.mxu0 0.0
    %2597 = vmatmul.mubr.f32.gmra.mrb[0].mxu0 %v2530
    %v2598 = vpop.f32.mrb[0].mxu0
    %v2599 = vadd.f32 0.0, %v2598
    %v2600 = vpop.f32.mrb[0].mxu0
    %2601 = vdwg.mxu0
    %v2602 = vsel %vm49, %v2380, 0.0
    %v2603 = vsel %vm49, %v2453, 0.0
    %v2604 = vadd.f32 %v2602, %v2603
    %v2605 = vsel %vm49, %v2526, 0.0
    %v2606 = vadd.f32 %v2604, %v2605
    %v2607 = vsel %vm49, %v2599, 0.0
    %v2608 = vadd.f32 %v2606, %v2607
    %v2609 = vadd.f32 %v2608, %v1322
    %v2610 = vadd.f32 %v1351, %v2609
    %v2611 = vsel %vm49, %v2610, 0.0
    %2612 = vadd.xlane.f32.xlu0 %v2611
    %v2613 = vpop.xlane.xlu0 %2612
    %v2614 = vmul.f32 %v2613, %v53
    %v2615 = vsub.f32 %v2610, %v2614
    %v2616 = vmul.f32 %v2615, %v2615
    %v2617 = vsel %vm49, %v2616, 0.0
    %2618 = vadd.xlane.f32.xlu0 %v2617
    %v2619 = vpop.xlane.xlu0 %2618
    %v2620 = vmul.f32 %v2619, %v53
    %v2621 = vadd.f32 %v2620, 1e-05
    %v2622 = vrsqrt.pop %v2621
    %v2623 = vmul.f32 %v2615, %v2622
    %v2624 = vmul.f32 %v1341, %v2623
    %v2625 = vadd.f32 %v2624, %v1346
    %v2626 = vadd.f32 %v2610, %v2625
    %s2627 = scalar_lea.vmem [#allocation2], 8
    %2628 = vst.msk [vmem:[%s2627] sm:$0xff] %vm49, %v2626
    // Predicated region
    $region18: #{tpu_custom_call.1} parent=1 // pred_check
      _
    $region19: #{tpu_custom_call.1} parent=1 // pred_check_branch
      %2630 = sbr.rel (0) target = $region21
    $region20: #{tpu_custom_call.1} parent=1 // pred_region
      %s2632 = ssub.s32 256, 256
      %2633 = vsyncadd [#allocation3], %s2632
      %s2634 = sshll.u32 [#allocation2], 4
      %s2635 = int_to_ptr.vmem [resolvable:$true] %s2634
      %2640 = dma.vmem_to_hbm [thread:$0]  %s2635, 256, %s4, [#allocation3], 128, 128, 8
    $region21: #{tpu_custom_call.1} parent=1 // pred_fallthru
      _
    // Predicated region
    $region22: #{tpu_custom_call.1} parent=1 // pred_check
      _
    $region23: #{tpu_custom_call.1} parent=1 // pred_check_branch
      %2642 = sbr.rel (0) target = $region25
    $region24: #{tpu_custom_call.1} parent=1 // pred_region
      %2643 = dma.done [#allocation3], 256
    $region25: #{tpu_custom_call.1} parent=1 // pred_fallthru
      _
    %2644 = vsyncpa [#allocation3], 1

</llo_original>
